<compile_context>
chip_gen: v7x
topology: tpu7x:2x2x1
jax: 0.10.0
libtpu: 0.0.40
codegen_flags: <defaults>
</compile_context>

<pallas_src>
import functools

import jax
import jax.numpy as jnp
import numpy as np
from jax import lax
from jax.experimental import pallas as pl
from jax.experimental.pallas import tpu as pltpu


# ---------------------------------------------------------------------------
# Fused kernel: 2-layer LSTM (last hidden state) + multi-head attention
# ---------------------------------------------------------------------------
def fused_lstm_mha_kernel(x_ref, w_lstm_ref, b_lstm_ref, w_attn_ref, b_attn_ref,
                          out_ref, *, num_heads, batch, patch_len, num_steps):
    P = patch_len
    T = num_steps
    B = batch
    N = 2 * B                          # M == 2 variables (asserted in wrapper)

    w_lstm = w_lstm_ref[...]           # (4, H, 4H): [wih0(pad), whh0, wih1, whh1]
    b_lstm = b_lstm_ref[...]           # (2, 4H)   : [b0, b1]  (b_ih + b_hh), f32
    H = w_lstm.shape[1]
    cdt = w_lstm.dtype                 # MXU operand dtype (bf16 fast path / f32)

    wih0 = w_lstm[0, 0:P, :]           # (P, 4H)   (rows P..H-1 are zero padding)
    whh0 = w_lstm[1]                   # (H, 4H)
    wih1 = w_lstm[2]
    whh1 = w_lstm[3]
    b0 = b_lstm[0:1, :]                # (1, 4H)
    b1 = b_lstm[1:2, :]

    def mm(a, w):                      # bf16/f32 operands, fp32 accumulation
        return jnp.dot(a.astype(cdt), w, preferred_element_type=jnp.float32)

    # ---- layer-0 input projection, hoisted off the recurrence chain --------
    # x_ref is (T*N, P), t-major with rows n = m*B + b inside each step block.
    xg = mm(x_ref[...], wih0) + b0     # (T*N, 4H), layer-0 bias folded in

    h0 = jnp.zeros((N, H), jnp.float32)
    c0 = jnp.zeros((N, H), jnp.float32)
    h1 = jnp.zeros((N, H), jnp.float32)
    c1 = jnp.zeros((N, H), jnp.float32)

    def cell(g, c):
        # One sigmoid + one tanh over the full 128-lane gate vector (EUP),
        # then slice the four 32-lane gates.
        sg = jax.nn.sigmoid(g)
        tg = jnp.tanh(g)
        i = sg[:, 0:H]
        f = sg[:, H:2 * H]
        o = sg[:, 3 * H:4 * H]
        gg = tg[:, 2 * H:3 * H]
        c_new = f * c + i * gg
        h_new = o * jnp.tanh(c_new)
        return h_new, c_new

    for t in range(T):                 # static, tiny trip count
        g0 = xg[t * N:(t + 1) * N, :] + mm(h0, whh0)
        h0, c0 = cell(g0, c0)
        g1 = mm(h0, wih1) + mm(h1, whh1) + b1     # split weights, no concat
        h1, c1 = cell(g1, c1)

    # M-major row layout: rows [0:B] -> variable 0 (external), [B:2B] -> target.
    x_external = h1[0:B, :]            # (B, E)
    x_target = h1[B:2 * B, :]          # (B, E)

    E = H
    hd = E // num_heads
    w_attn = w_attn_ref[...]           # (4, E, E): [wq(*scale), wk, wv, wo]
    b_attn = b_attn_ref[...]           # (4, E)   : [bq(*scale), bk, bv, bo], f32
    wq, wk, wv, wo = w_attn[0], w_attn[1], w_attn[2], w_attn[3]
    bq, bk, bv, bo = (b_attn[0:1, :], b_attn[1:2, :],
                      b_attn[2:3, :], b_attn[3:4, :])

    # 1/sqrt(hd) already folded into wq / bq at pack time.
    q = (mm(x_target, wq) + bq).astype(cdt)
    k = (mm(x_external, wk) + bk).astype(cdt)
    v = (mm(x_external, wv) + bv).astype(cdt)

    dn = (((1,), (1,)), ((), ()))      # contract last dims (q @ k^T)
    heads = []
    for h in range(num_heads):         # static, 4 heads
        qh = q[:, h * hd:(h + 1) * hd]
        kh = k[:, h * hd:(h + 1) * hd]
        vh = v[:, h * hd:(h + 1) * hd]
        s = lax.dot_general(qh, kh, dn, preferred_element_type=jnp.float32)  # (B, B)
        s = s - jnp.max(s, axis=-1, keepdims=True)
        p = jnp.exp(s)
        p = p / jnp.sum(p, axis=-1, keepdims=True)        # exact softmax
        heads.append(jnp.dot(p.astype(cdt), vh, preferred_element_type=jnp.float32))

    attn = jnp.concatenate(heads, axis=-1)                # (B, E)
    out_ref[...] = mm(attn, wo) + bo                      # single out-projection


# ---------------------------------------------------------------------------
# Wrapper
# ---------------------------------------------------------------------------
def model_forward(x, packed, patch_num, patch_len, d_model, num_heads=4):
    """x: (B, L, M) float32  ->  (B, 1, d_model).  Requires M == 2 (see header)."""
    B, L, M = x.shape
    assert M == 2, "PyTorch nn.MultiheadAttention(batch_first=False) path only runs for M == 2"
    assert patch_num * patch_len == L
    N = M * B

    # Lay x out as (T*N, P), t-major with rows n = m*B + b, so the layer-0
    # input projection is one batched matmul and each per-step slice inside
    # the kernel is a contiguous static sublane block.
    # TODO(synk): this is the only op left outside the kernel; folding it in
    # would need an in-kernel minor-dim transpose of a (B, L, M)=(2,16,2)
    # array (relayout with lowering risk for ~256 B of data), so it stays here.
    x2d = x.reshape(B, patch_num, patch_len, M).transpose(1, 3, 0, 2)
    x2d = x2d.reshape(patch_num * N, patch_len)

    vmem = pl.BlockSpec(memory_space=pltpu.MemorySpace.VMEM)
    out = pl.pallas_call(
        functools.partial(fused_lstm_mha_kernel, num_heads=num_heads,
                          batch=B, patch_len=patch_len, num_steps=patch_num),
        out_shape=jax.ShapeDtypeStruct((B, d_model), jnp.float32),
        in_specs=[vmem] * 5,
        out_specs=vmem,
    )(x2d, packed["w_lstm"], packed["b_lstm"], packed["w_attn"], packed["b_attn"])
    # TODO(synk): if B is ever scaled up, add a parallel grid over rows for the
    # LSTM part; at B=2 a grid only adds per-step overhead.
    return out.reshape(B, 1, d_model)


# ---------------------------------------------------------------------------
# Parameter packing (one-time init work): stack weights/biases, fold the
# attention scale, cast MXU operands to the requested dtype.
# ---------------------------------------------------------------------------
def pack_params(p, d_model, num_heads, operand_dtype=jnp.bfloat16):
    H = d_model
    P = p["wih0_T"].shape[0]
    assert P <= H
    hd = d_model // num_heads
    scale = 1.0 / float(np.sqrt(hd))

    wih0_pad = jnp.zeros((H, 4 * H), jnp.float32).at[:P].set(p["wih0_T"])
    w_lstm = jnp.stack([wih0_pad, p["whh0_T"], p["wih1_T"], p["whh1_T"]]
                       ).astype(operand_dtype)                       # (4, H, 4H)
    b_lstm = jnp.concatenate([p["b0"], p["b1"]], axis=0)             # (2, 4H) f32
    w_attn = jnp.stack([p["wq_T"] * scale, p["wk_T"], p["wv_T"], p["wo_T"]]
                       ).astype(operand_dtype)                       # (4, d, d)
    b_attn = jnp.concatenate([p["bq"] * scale, p["bk"], p["bv"], p["bo"]],
                             axis=0)                                 # (4, d) f32
    return {"w_lstm": w_lstm, "b_lstm": b_lstm, "w_attn": w_attn, "b_attn": b_attn}


# ---------------------------------------------------------------------------
# Pure-JAX fp32 reference (faithful to the PyTorch module, unfused weights)
# ---------------------------------------------------------------------------
def ref_forward(x, p, patch_num, patch_len, d_model, num_heads=4):
    B, L, M = x.shape
    H = d_model
    xp = jnp.transpose(x, (0, 2, 1)).reshape(B * M, patch_num, patch_len)  # b-major, as in PyTorch

    def cell(x_t, h, c, wih, whh, b):
        g = x_t @ wih + h @ whh + b
        i = jax.nn.sigmoid(g[:, :H]); f = jax.nn.sigmoid(g[:, H:2 * H])
        gg = jnp.tanh(g[:, 2 * H:3 * H]); o = jax.nn.sigmoid(g[:, 3 * H:])
        c = f * c + i * gg
        return o * jnp.tanh(c), c

    N = B * M
    h0 = c0 = h1 = c1 = jnp.zeros((N, H), jnp.float32)
    for t in range(patch_num):
        h0, c0 = cell(xp[:, t], h0, c0, p["wih0_T"], p["whh0_T"], p["b0"])
        h1, c1 = cell(h0, h1, c1, p["wih1_T"], p["whh1_T"], p["b1"])
    lstm_out = h1.reshape(B, M, H)
    x_external = lstm_out[:, 0, :]          # lstm_out[:, :-1, :] squeezed (M == 2)
    x_target = lstm_out[:, 1, :]            # lstm_out[:, -1:, :] squeezed

    hd = d_model // num_heads
    q = x_target @ p["wq_T"] + p["bq"]
    k = x_external @ p["wk_T"] + p["bk"]
    v = x_external @ p["wv_T"] + p["bv"]
    outs = []
    for h in range(num_heads):
        qh = q[:, h * hd:(h + 1) * hd] / np.sqrt(hd)
        kh = k[:, h * hd:(h + 1) * hd]
        vh = v[:, h * hd:(h + 1) * hd]
        outs.append(jax.nn.softmax(qh @ kh.T, axis=-1) @ vh)
    attn = jnp.concatenate(outs, axis=-1)
    return (attn @ p["wo_T"] + p["bo"]).reshape(B, 1, d_model)


# ---------------------------------------------------------------------------
# Deterministic parameter init (shapes match the PyTorch module's __init__)
# ---------------------------------------------------------------------------
def init_params(key, patch_len, d_model):
    H = d_model
    ks = jax.random.split(key, 16)
    u = lambda k, shape, bound: jax.random.uniform(k, shape, jnp.float32, -bound, bound)
    kb = 1.0 / np.sqrt(H)
    kd = 1.0 / np.sqrt(d_model)
    return {
        "wih0_T": u(ks[0], (patch_len, 4 * H), kb),
        "whh0_T": u(ks[1], (H, 4 * H), kb),
        "b0":     u(ks[2], (1, 4 * H), kb) + u(ks[3], (1, 4 * H), kb),   # b_ih + b_hh
        "wih1_T": u(ks[4], (H, 4 * H), kb),
        "whh1_T": u(ks[5], (H, 4 * H), kb),
        "b1":     u(ks[6], (1, 4 * H), kb) + u(ks[7], (1, 4 * H), kb),
        "wq_T":   u(ks[8], (d_model, d_model), kd),
        "wk_T":   u(ks[9], (d_model, d_model), kd),
        "wv_T":   u(ks[10], (d_model, d_model), kd),
        "bq":     u(ks[11], (1, d_model), kd),
        "bk":     u(ks[12], (1, d_model), kd),
        "bv":     u(ks[13], (1, d_model), kd),
        "wo_T":   u(ks[14], (d_model, d_model), kd),
        "bo":     u(ks[15], (1, d_model), kd),
    }


# ---------------------------------------------------------------------------
if __name__ == "__main__":
    # configs: seq_len=16, pred_len=4 -> patch_num=4, patch_len=4, d_model=32
    B, L, M = 2, 16, 2
    pred_len = 4
    patch_num = L // pred_len          # 4
    patch_len = L // patch_num         # 4  (reshape requires patch_num*patch_len == L)
    d_model = 32
    num_heads = 4

    key = jax.random.PRNGKey(0)
    k_x, k_p = jax.random.split(key)
    x = jax.random.normal(k_x, (B, L, M), jnp.float32)
    params = init_params(k_p, patch_len, d_model)
    ref = ref_forward(x, params, patch_num, patch_len, d_model, num_heads)

    # 1) fp32-operand variant: tight check of kernel semantics (exact softmax).
    packed_f32 = pack_params(params, d_model, num_heads, jnp.float32)
    out_f32 = model_forward(x, packed_f32, patch_num, patch_len, d_model, num_heads)
    out_f32 = jax.block_until_ready(out_f32)
    assert out_f32.shape == (B, 1, d_model), out_f32.shape
    np.testing.assert_allclose(np.asarray(out_f32), np.asarray(ref),
                               rtol=2e-3, atol=2e-3)

    # 2) bf16 MXU-operand fast path (fp32 accumulation / gate math) -- the
    #    default per the v5e/v6e/v7x review items; looser tolerance vs fp32 ref.
    packed_bf16 = pack_params(params, d_model, num_heads, jnp.bfloat16)
    out_bf16 = model_forward(x, packed_bf16, patch_num, patch_len, d_model, num_heads)
    out_bf16 = jax.block_until_ready(out_bf16)
    assert out_bf16.shape == (B, 1, d_model), out_bf16.shape
    np.testing.assert_allclose(np.asarray(out_bf16), np.asarray(ref),
                               rtol=5e-2, atol=5e-2)

    print("KERNEL_OK")
</pallas_src>

<mosaic_0001>
module attributes {stable_mosaic.version = 11 : i64} {
  func.func @fused_lstm_mha_kernel(%arg0: memref<16x4xf32, #tpu.memory_space<vmem>>, %arg1: memref<4x32x128xf32, #tpu.memory_space<vmem>>, %arg2: memref<2x128xf32, #tpu.memory_space<vmem>>, %arg3: memref<4x32x32xf32, #tpu.memory_space<vmem>>, %arg4: memref<4x32xf32, #tpu.memory_space<vmem>>, %arg5: memref<2x32xf32, #tpu.memory_space<vmem>>) attributes {dimension_semantics = [], scalar_prefetch = 0 : i64, scratch_operands = 0 : i64, tpu.core_type = #tpu.core_type<tc>} {
    %c0 = arith.constant 0 : index
    %c0_0 = arith.constant 0 : index
    %c0_1 = arith.constant 0 : index
    %0 = vector.load %arg1[%c0, %c0_0, %c0_1] : memref<4x32x128xf32, #tpu.memory_space<vmem>>, vector<4x32x128xf32>
    %c0_2 = arith.constant 0 : index
    %c0_3 = arith.constant 0 : index
    %1 = vector.load %arg2[%c0_2, %c0_3] : memref<2x128xf32, #tpu.memory_space<vmem>>, vector<2x128xf32>
    %2 = vector.extract_strided_slice %0 {offsets = [0, 0, 0], sizes = [1, 4, 128], strides = [1, 1, 1]} : vector<4x32x128xf32> to vector<1x4x128xf32>
    %3 = vector.shape_cast %2 : vector<1x4x128xf32> to vector<4x128xf32>
    %4 = vector.extract_strided_slice %0 {offsets = [1, 0, 0], sizes = [1, 32, 128], strides = [1, 1, 1]} : vector<4x32x128xf32> to vector<1x32x128xf32>
    %5 = vector.shape_cast %4 : vector<1x32x128xf32> to vector<32x128xf32>
    %6 = vector.extract_strided_slice %0 {offsets = [2, 0, 0], sizes = [1, 32, 128], strides = [1, 1, 1]} : vector<4x32x128xf32> to vector<1x32x128xf32>
    %7 = vector.shape_cast %6 : vector<1x32x128xf32> to vector<32x128xf32>
    %8 = vector.extract_strided_slice %0 {offsets = [3, 0, 0], sizes = [1, 32, 128], strides = [1, 1, 1]} : vector<4x32x128xf32> to vector<1x32x128xf32>
    %9 = vector.shape_cast %8 : vector<1x32x128xf32> to vector<32x128xf32>
    %10 = vector.extract_strided_slice %1 {offsets = [0, 0], sizes = [1, 128], strides = [1, 1]} : vector<2x128xf32> to vector<1x128xf32>
    %11 = vector.extract_strided_slice %1 {offsets = [1, 0], sizes = [1, 128], strides = [1, 1]} : vector<2x128xf32> to vector<1x128xf32>
    %c0_4 = arith.constant 0 : index
    %c0_5 = arith.constant 0 : index
    %12 = vector.load %arg0[%c0_4, %c0_5] : memref<16x4xf32, #tpu.memory_space<vmem>>, vector<16x4xf32>
    %cst = arith.constant dense<0.000000e+00> : vector<16x128xf32>
    %13 = tpu.matmul %12, %3, %cst {dimension_numbers = #tpu.dot_dimension_numbers<[1], [0], [0], [1], [0, 0, 1, 1], [], []>} : vector<16x4xf32>, vector<4x128xf32>, vector<16x128xf32> -> vector<16x128xf32>
    %14 = vector.broadcast %10 : vector<1x128xf32> to vector<16x128xf32>
    %15 = arith.addf %13, %14 : vector<16x128xf32>
    %cst_6 = arith.constant 0.000000e+00 : f32
    %16 = vector.broadcast %cst_6 : f32 to vector<4x32xf32>
    %cst_7 = arith.constant 0.000000e+00 : f32
    %17 = vector.broadcast %cst_7 : f32 to vector<4x32xf32>
    %cst_8 = arith.constant 0.000000e+00 : f32
    %18 = vector.broadcast %cst_8 : f32 to vector<4x32xf32>
    %cst_9 = arith.constant 0.000000e+00 : f32
    %19 = vector.broadcast %cst_9 : f32 to vector<4x32xf32>
    %20 = vector.extract_strided_slice %15 {offsets = [0, 0], sizes = [4, 128], strides = [1, 1]} : vector<16x128xf32> to vector<4x128xf32>
    %cst_10 = arith.constant dense<0.000000e+00> : vector<4x128xf32>
    %21 = tpu.matmul %16, %5, %cst_10 {dimension_numbers = #tpu.dot_dimension_numbers<[1], [0], [0], [1], [0, 0, 1, 1], [], []>} : vector<4x32xf32>, vector<32x128xf32>, vector<4x128xf32> -> vector<4x128xf32>
    %22 = arith.addf %20, %21 : vector<4x128xf32>
    %23 = arith.negf %22 : vector<4x128xf32>
    %24 = math.exp %23 : vector<4x128xf32>
    %cst_11 = arith.constant 1.000000e+00 : f32
    %25 = vector.broadcast %cst_11 : f32 to vector<4x128xf32>
    %26 = arith.addf %25, %24 : vector<4x128xf32>
    %27 = arith.divf %25, %26 : vector<4x128xf32>
    %28 = math.tanh %22 : vector<4x128xf32>
    %29 = vector.extract_strided_slice %27 {offsets = [0, 0], sizes = [4, 32], strides = [1, 1]} : vector<4x128xf32> to vector<4x32xf32>
    %30 = vector.extract_strided_slice %27 {offsets = [0, 32], sizes = [4, 32], strides = [1, 1]} : vector<4x128xf32> to vector<4x32xf32>
    %31 = vector.extract_strided_slice %27 {offsets = [0, 96], sizes = [4, 32], strides = [1, 1]} : vector<4x128xf32> to vector<4x32xf32>
    %32 = vector.extract_strided_slice %28 {offsets = [0, 64], sizes = [4, 32], strides = [1, 1]} : vector<4x128xf32> to vector<4x32xf32>
    %33 = arith.mulf %30, %17 : vector<4x32xf32>
    %34 = arith.mulf %29, %32 : vector<4x32xf32>
    %35 = arith.addf %33, %34 : vector<4x32xf32>
    %36 = math.tanh %35 : vector<4x32xf32>
    %37 = arith.mulf %31, %36 : vector<4x32xf32>
    %cst_12 = arith.constant dense<0.000000e+00> : vector<4x128xf32>
    %38 = tpu.matmul %37, %7, %cst_12 {dimension_numbers = #tpu.dot_dimension_numbers<[1], [0], [0], [1], [0, 0, 1, 1], [], []>} : vector<4x32xf32>, vector<32x128xf32>, vector<4x128xf32> -> vector<4x128xf32>
    %cst_13 = arith.constant dense<0.000000e+00> : vector<4x128xf32>
    %39 = tpu.matmul %18, %9, %cst_13 {dimension_numbers = #tpu.dot_dimension_numbers<[1], [0], [0], [1], [0, 0, 1, 1], [], []>} : vector<4x32xf32>, vector<32x128xf32>, vector<4x128xf32> -> vector<4x128xf32>
    %40 = arith.addf %38, %39 : vector<4x128xf32>
    %41 = vector.broadcast %11 : vector<1x128xf32> to vector<4x128xf32>
    %42 = arith.addf %40, %41 : vector<4x128xf32>
    %43 = arith.negf %42 : vector<4x128xf32>
    %44 = math.exp %43 : vector<4x128xf32>
    %cst_14 = arith.constant 1.000000e+00 : f32
    %45 = vector.broadcast %cst_14 : f32 to vector<4x128xf32>
    %46 = arith.addf %45, %44 : vector<4x128xf32>
    %47 = arith.divf %45, %46 : vector<4x128xf32>
    %48 = math.tanh %42 : vector<4x128xf32>
    %49 = vector.extract_strided_slice %47 {offsets = [0, 0], sizes = [4, 32], strides = [1, 1]} : vector<4x128xf32> to vector<4x32xf32>
    %50 = vector.extract_strided_slice %47 {offsets = [0, 32], sizes = [4, 32], strides = [1, 1]} : vector<4x128xf32> to vector<4x32xf32>
    %51 = vector.extract_strided_slice %47 {offsets = [0, 96], sizes = [4, 32], strides = [1, 1]} : vector<4x128xf32> to vector<4x32xf32>
    %52 = vector.extract_strided_slice %48 {offsets = [0, 64], sizes = [4, 32], strides = [1, 1]} : vector<4x128xf32> to vector<4x32xf32>
    %53 = arith.mulf %50, %19 : vector<4x32xf32>
    %54 = arith.mulf %49, %52 : vector<4x32xf32>
    %55 = arith.addf %53, %54 : vector<4x32xf32>
    %56 = math.tanh %55 : vector<4x32xf32>
    %57 = arith.mulf %51, %56 : vector<4x32xf32>
    %58 = vector.extract_strided_slice %15 {offsets = [4, 0], sizes = [4, 128], strides = [1, 1]} : vector<16x128xf32> to vector<4x128xf32>
    %cst_15 = arith.constant dense<0.000000e+00> : vector<4x128xf32>
    %59 = tpu.matmul %37, %5, %cst_15 {dimension_numbers = #tpu.dot_dimension_numbers<[1], [0], [0], [1], [0, 0, 1, 1], [], []>} : vector<4x32xf32>, vector<32x128xf32>, vector<4x128xf32> -> vector<4x128xf32>
    %60 = arith.addf %58, %59 : vector<4x128xf32>
    %61 = arith.negf %60 : vector<4x128xf32>
    %62 = math.exp %61 : vector<4x128xf32>
    %cst_16 = arith.constant 1.000000e+00 : f32
    %63 = vector.broadcast %cst_16 : f32 to vector<4x128xf32>
    %64 = arith.addf %63, %62 : vector<4x128xf32>
    %65 = arith.divf %63, %64 : vector<4x128xf32>
    %66 = math.tanh %60 : vector<4x128xf32>
    %67 = vector.extract_strided_slice %65 {offsets = [0, 0], sizes = [4, 32], strides = [1, 1]} : vector<4x128xf32> to vector<4x32xf32>
    %68 = vector.extract_strided_slice %65 {offsets = [0, 32], sizes = [4, 32], strides = [1, 1]} : vector<4x128xf32> to vector<4x32xf32>
    %69 = vector.extract_strided_slice %65 {offsets = [0, 96], sizes = [4, 32], strides = [1, 1]} : vector<4x128xf32> to vector<4x32xf32>
    %70 = vector.extract_strided_slice %66 {offsets = [0, 64], sizes = [4, 32], strides = [1, 1]} : vector<4x128xf32> to vector<4x32xf32>
    %71 = arith.mulf %68, %35 : vector<4x32xf32>
    %72 = arith.mulf %67, %70 : vector<4x32xf32>
    %73 = arith.addf %71, %72 : vector<4x32xf32>
    %74 = math.tanh %73 : vector<4x32xf32>
    %75 = arith.mulf %69, %74 : vector<4x32xf32>
    %cst_17 = arith.constant dense<0.000000e+00> : vector<4x128xf32>
    %76 = tpu.matmul %75, %7, %cst_17 {dimension_numbers = #tpu.dot_dimension_numbers<[1], [0], [0], [1], [0, 0, 1, 1], [], []>} : vector<4x32xf32>, vector<32x128xf32>, vector<4x128xf32> -> vector<4x128xf32>
    %cst_18 = arith.constant dense<0.000000e+00> : vector<4x128xf32>
    %77 = tpu.matmul %57, %9, %cst_18 {dimension_numbers = #tpu.dot_dimension_numbers<[1], [0], [0], [1], [0, 0, 1, 1], [], []>} : vector<4x32xf32>, vector<32x128xf32>, vector<4x128xf32> -> vector<4x128xf32>
    %78 = arith.addf %76, %77 : vector<4x128xf32>
    %79 = vector.broadcast %11 : vector<1x128xf32> to vector<4x128xf32>
    %80 = arith.addf %78, %79 : vector<4x128xf32>
    %81 = arith.negf %80 : vector<4x128xf32>
    %82 = math.exp %81 : vector<4x128xf32>
    %cst_19 = arith.constant 1.000000e+00 : f32
    %83 = vector.broadcast %cst_19 : f32 to vector<4x128xf32>
    %84 = arith.addf %83, %82 : vector<4x128xf32>
    %85 = arith.divf %83, %84 : vector<4x128xf32>
    %86 = math.tanh %80 : vector<4x128xf32>
    %87 = vector.extract_strided_slice %85 {offsets = [0, 0], sizes = [4, 32], strides = [1, 1]} : vector<4x128xf32> to vector<4x32xf32>
    %88 = vector.extract_strided_slice %85 {offsets = [0, 32], sizes = [4, 32], strides = [1, 1]} : vector<4x128xf32> to vector<4x32xf32>
    %89 = vector.extract_strided_slice %85 {offsets = [0, 96], sizes = [4, 32], strides = [1, 1]} : vector<4x128xf32> to vector<4x32xf32>
    %90 = vector.extract_strided_slice %86 {offsets = [0, 64], sizes = [4, 32], strides = [1, 1]} : vector<4x128xf32> to vector<4x32xf32>
    %91 = arith.mulf %88, %55 : vector<4x32xf32>
    %92 = arith.mulf %87, %90 : vector<4x32xf32>
    %93 = arith.addf %91, %92 : vector<4x32xf32>
    %94 = math.tanh %93 : vector<4x32xf32>
    %95 = arith.mulf %89, %94 : vector<4x32xf32>
    %96 = vector.extract_strided_slice %15 {offsets = [8, 0], sizes = [4, 128], strides = [1, 1]} : vector<16x128xf32> to vector<4x128xf32>
    %cst_20 = arith.constant dense<0.000000e+00> : vector<4x128xf32>
    %97 = tpu.matmul %75, %5, %cst_20 {dimension_numbers = #tpu.dot_dimension_numbers<[1], [0], [0], [1], [0, 0, 1, 1], [], []>} : vector<4x32xf32>, vector<32x128xf32>, vector<4x128xf32> -> vector<4x128xf32>
    %98 = arith.addf %96, %97 : vector<4x128xf32>
    %99 = arith.negf %98 : vector<4x128xf32>
    %100 = math.exp %99 : vector<4x128xf32>
    %cst_21 = arith.constant 1.000000e+00 : f32
    %101 = vector.broadcast %cst_21 : f32 to vector<4x128xf32>
    %102 = arith.addf %101, %100 : vector<4x128xf32>
    %103 = arith.divf %101, %102 : vector<4x128xf32>
    %104 = math.tanh %98 : vector<4x128xf32>
    %105 = vector.extract_strided_slice %103 {offsets = [0, 0], sizes = [4, 32], strides = [1, 1]} : vector<4x128xf32> to vector<4x32xf32>
    %106 = vector.extract_strided_slice %103 {offsets = [0, 32], sizes = [4, 32], strides = [1, 1]} : vector<4x128xf32> to vector<4x32xf32>
    %107 = vector.extract_strided_slice %103 {offsets = [0, 96], sizes = [4, 32], strides = [1, 1]} : vector<4x128xf32> to vector<4x32xf32>
    %108 = vector.extract_strided_slice %104 {offsets = [0, 64], sizes = [4, 32], strides = [1, 1]} : vector<4x128xf32> to vector<4x32xf32>
    %109 = arith.mulf %106, %73 : vector<4x32xf32>
    %110 = arith.mulf %105, %108 : vector<4x32xf32>
    %111 = arith.addf %109, %110 : vector<4x32xf32>
    %112 = math.tanh %111 : vector<4x32xf32>
    %113 = arith.mulf %107, %112 : vector<4x32xf32>
    %cst_22 = arith.constant dense<0.000000e+00> : vector<4x128xf32>
    %114 = tpu.matmul %113, %7, %cst_22 {dimension_numbers = #tpu.dot_dimension_numbers<[1], [0], [0], [1], [0, 0, 1, 1], [], []>} : vector<4x32xf32>, vector<32x128xf32>, vector<4x128xf32> -> vector<4x128xf32>
    %cst_23 = arith.constant dense<0.000000e+00> : vector<4x128xf32>
    %115 = tpu.matmul %95, %9, %cst_23 {dimension_numbers = #tpu.dot_dimension_numbers<[1], [0], [0], [1], [0, 0, 1, 1], [], []>} : vector<4x32xf32>, vector<32x128xf32>, vector<4x128xf32> -> vector<4x128xf32>
    %116 = arith.addf %114, %115 : vector<4x128xf32>
    %117 = vector.broadcast %11 : vector<1x128xf32> to vector<4x128xf32>
    %118 = arith.addf %116, %117 : vector<4x128xf32>
    %119 = arith.negf %118 : vector<4x128xf32>
    %120 = math.exp %119 : vector<4x128xf32>
    %cst_24 = arith.constant 1.000000e+00 : f32
    %121 = vector.broadcast %cst_24 : f32 to vector<4x128xf32>
    %122 = arith.addf %121, %120 : vector<4x128xf32>
    %123 = arith.divf %121, %122 : vector<4x128xf32>
    %124 = math.tanh %118 : vector<4x128xf32>
    %125 = vector.extract_strided_slice %123 {offsets = [0, 0], sizes = [4, 32], strides = [1, 1]} : vector<4x128xf32> to vector<4x32xf32>
    %126 = vector.extract_strided_slice %123 {offsets = [0, 32], sizes = [4, 32], strides = [1, 1]} : vector<4x128xf32> to vector<4x32xf32>
    %127 = vector.extract_strided_slice %123 {offsets = [0, 96], sizes = [4, 32], strides = [1, 1]} : vector<4x128xf32> to vector<4x32xf32>
    %128 = vector.extract_strided_slice %124 {offsets = [0, 64], sizes = [4, 32], strides = [1, 1]} : vector<4x128xf32> to vector<4x32xf32>
    %129 = arith.mulf %126, %93 : vector<4x32xf32>
    %130 = arith.mulf %125, %128 : vector<4x32xf32>
    %131 = arith.addf %129, %130 : vector<4x32xf32>
    %132 = math.tanh %131 : vector<4x32xf32>
    %133 = arith.mulf %127, %132 : vector<4x32xf32>
    %134 = vector.extract_strided_slice %15 {offsets = [12, 0], sizes = [4, 128], strides = [1, 1]} : vector<16x128xf32> to vector<4x128xf32>
    %cst_25 = arith.constant dense<0.000000e+00> : vector<4x128xf32>
    %135 = tpu.matmul %113, %5, %cst_25 {dimension_numbers = #tpu.dot_dimension_numbers<[1], [0], [0], [1], [0, 0, 1, 1], [], []>} : vector<4x32xf32>, vector<32x128xf32>, vector<4x128xf32> -> vector<4x128xf32>
    %136 = arith.addf %134, %135 : vector<4x128xf32>
    %137 = arith.negf %136 : vector<4x128xf32>
    %138 = math.exp %137 : vector<4x128xf32>
    %cst_26 = arith.constant 1.000000e+00 : f32
    %139 = vector.broadcast %cst_26 : f32 to vector<4x128xf32>
    %140 = arith.addf %139, %138 : vector<4x128xf32>
    %141 = arith.divf %139, %140 : vector<4x128xf32>
    %142 = math.tanh %136 : vector<4x128xf32>
    %143 = vector.extract_strided_slice %141 {offsets = [0, 0], sizes = [4, 32], strides = [1, 1]} : vector<4x128xf32> to vector<4x32xf32>
    %144 = vector.extract_strided_slice %141 {offsets = [0, 32], sizes = [4, 32], strides = [1, 1]} : vector<4x128xf32> to vector<4x32xf32>
    %145 = vector.extract_strided_slice %141 {offsets = [0, 96], sizes = [4, 32], strides = [1, 1]} : vector<4x128xf32> to vector<4x32xf32>
    %146 = vector.extract_strided_slice %142 {offsets = [0, 64], sizes = [4, 32], strides = [1, 1]} : vector<4x128xf32> to vector<4x32xf32>
    %147 = arith.mulf %144, %111 : vector<4x32xf32>
    %148 = arith.mulf %143, %146 : vector<4x32xf32>
    %149 = arith.addf %147, %148 : vector<4x32xf32>
    %150 = math.tanh %149 : vector<4x32xf32>
    %151 = arith.mulf %145, %150 : vector<4x32xf32>
    %cst_27 = arith.constant dense<0.000000e+00> : vector<4x128xf32>
    %152 = tpu.matmul %151, %7, %cst_27 {dimension_numbers = #tpu.dot_dimension_numbers<[1], [0], [0], [1], [0, 0, 1, 1], [], []>} : vector<4x32xf32>, vector<32x128xf32>, vector<4x128xf32> -> vector<4x128xf32>
    %cst_28 = arith.constant dense<0.000000e+00> : vector<4x128xf32>
    %153 = tpu.matmul %133, %9, %cst_28 {dimension_numbers = #tpu.dot_dimension_numbers<[1], [0], [0], [1], [0, 0, 1, 1], [], []>} : vector<4x32xf32>, vector<32x128xf32>, vector<4x128xf32> -> vector<4x128xf32>
    %154 = arith.addf %152, %153 : vector<4x128xf32>
    %155 = vector.broadcast %11 : vector<1x128xf32> to vector<4x128xf32>
    %156 = arith.addf %154, %155 : vector<4x128xf32>
    %157 = arith.negf %156 : vector<4x128xf32>
    %158 = math.exp %157 : vector<4x128xf32>
    %cst_29 = arith.constant 1.000000e+00 : f32
    %159 = vector.broadcast %cst_29 : f32 to vector<4x128xf32>
    %160 = arith.addf %159, %158 : vector<4x128xf32>
    %161 = arith.divf %159, %160 : vector<4x128xf32>
    %162 = math.tanh %156 : vector<4x128xf32>
    %163 = vector.extract_strided_slice %161 {offsets = [0, 0], sizes = [4, 32], strides = [1, 1]} : vector<4x128xf32> to vector<4x32xf32>
    %164 = vector.extract_strided_slice %161 {offsets = [0, 32], sizes = [4, 32], strides = [1, 1]} : vector<4x128xf32> to vector<4x32xf32>
    %165 = vector.extract_strided_slice %161 {offsets = [0, 96], sizes = [4, 32], strides = [1, 1]} : vector<4x128xf32> to vector<4x32xf32>
    %166 = vector.extract_strided_slice %162 {offsets = [0, 64], sizes = [4, 32], strides = [1, 1]} : vector<4x128xf32> to vector<4x32xf32>
    %167 = arith.mulf %164, %131 : vector<4x32xf32>
    %168 = arith.mulf %163, %166 : vector<4x32xf32>
    %169 = arith.addf %167, %168 : vector<4x32xf32>
    %170 = math.tanh %169 : vector<4x32xf32>
    %171 = arith.mulf %165, %170 : vector<4x32xf32>
    %172 = vector.extract_strided_slice %171 {offsets = [0, 0], sizes = [2, 32], strides = [1, 1]} : vector<4x32xf32> to vector<2x32xf32>
    %173 = vector.extract_strided_slice %171 {offsets = [2, 0], sizes = [2, 32], strides = [1, 1]} : vector<4x32xf32> to vector<2x32xf32>
    %c0_30 = arith.constant 0 : index
    %c0_31 = arith.constant 0 : index
    %c0_32 = arith.constant 0 : index
    %174 = vector.load %arg3[%c0_30, %c0_31, %c0_32] : memref<4x32x32xf32, #tpu.memory_space<vmem>>, vector<4x32x32xf32>
    %c0_33 = arith.constant 0 : index
    %c0_34 = arith.constant 0 : index
    %175 = vector.load %arg4[%c0_33, %c0_34] : memref<4x32xf32, #tpu.memory_space<vmem>>, vector<4x32xf32>
    %176 = vector.extract_strided_slice %174 {offsets = [0, 0, 0], sizes = [1, 32, 32], strides = [1, 1, 1]} : vector<4x32x32xf32> to vector<1x32x32xf32>
    %177 = vector.shape_cast %176 : vector<1x32x32xf32> to vector<32x32xf32>
    %178 = vector.extract_strided_slice %174 {offsets = [1, 0, 0], sizes = [1, 32, 32], strides = [1, 1, 1]} : vector<4x32x32xf32> to vector<1x32x32xf32>
    %179 = vector.shape_cast %178 : vector<1x32x32xf32> to vector<32x32xf32>
    %180 = vector.extract_strided_slice %174 {offsets = [2, 0, 0], sizes = [1, 32, 32], strides = [1, 1, 1]} : vector<4x32x32xf32> to vector<1x32x32xf32>
    %181 = vector.shape_cast %180 : vector<1x32x32xf32> to vector<32x32xf32>
    %182 = vector.extract_strided_slice %174 {offsets = [3, 0, 0], sizes = [1, 32, 32], strides = [1, 1, 1]} : vector<4x32x32xf32> to vector<1x32x32xf32>
    %183 = vector.shape_cast %182 : vector<1x32x32xf32> to vector<32x32xf32>
    %184 = vector.extract_strided_slice %175 {offsets = [0, 0], sizes = [1, 32], strides = [1, 1]} : vector<4x32xf32> to vector<1x32xf32>
    %185 = vector.extract_strided_slice %175 {offsets = [1, 0], sizes = [1, 32], strides = [1, 1]} : vector<4x32xf32> to vector<1x32xf32>
    %186 = vector.extract_strided_slice %175 {offsets = [2, 0], sizes = [1, 32], strides = [1, 1]} : vector<4x32xf32> to vector<1x32xf32>
    %187 = vector.extract_strided_slice %175 {offsets = [3, 0], sizes = [1, 32], strides = [1, 1]} : vector<4x32xf32> to vector<1x32xf32>
    %cst_35 = arith.constant dense<0.000000e+00> : vector<2x32xf32>
    %188 = tpu.matmul %173, %177, %cst_35 {dimension_numbers = #tpu.dot_dimension_numbers<[1], [0], [0], [1], [0, 0, 1, 1], [], []>} : vector<2x32xf32>, vector<32x32xf32>, vector<2x32xf32> -> vector<2x32xf32>
    %189 = vector.broadcast %184 : vector<1x32xf32> to vector<2x32xf32>
    %190 = arith.addf %188, %189 : vector<2x32xf32>
    %cst_36 = arith.constant dense<0.000000e+00> : vector<2x32xf32>
    %191 = tpu.matmul %172, %179, %cst_36 {dimension_numbers = #tpu.dot_dimension_numbers<[1], [0], [0], [1], [0, 0, 1, 1], [], []>} : vector<2x32xf32>, vector<32x32xf32>, vector<2x32xf32> -> vector<2x32xf32>
    %192 = vector.broadcast %185 : vector<1x32xf32> to vector<2x32xf32>
    %193 = arith.addf %191, %192 : vector<2x32xf32>
    %cst_37 = arith.constant dense<0.000000e+00> : vector<2x32xf32>
    %194 = tpu.matmul %172, %181, %cst_37 {dimension_numbers = #tpu.dot_dimension_numbers<[1], [0], [0], [1], [0, 0, 1, 1], [], []>} : vector<2x32xf32>, vector<32x32xf32>, vector<2x32xf32> -> vector<2x32xf32>
    %195 = vector.broadcast %186 : vector<1x32xf32> to vector<2x32xf32>
    %196 = arith.addf %194, %195 : vector<2x32xf32>
    %197 = vector.extract_strided_slice %190 {offsets = [0, 0], sizes = [2, 8], strides = [1, 1]} : vector<2x32xf32> to vector<2x8xf32>
    %198 = vector.extract_strided_slice %193 {offsets = [0, 0], sizes = [2, 8], strides = [1, 1]} : vector<2x32xf32> to vector<2x8xf32>
    %199 = vector.extract_strided_slice %196 {offsets = [0, 0], sizes = [2, 8], strides = [1, 1]} : vector<2x32xf32> to vector<2x8xf32>
    %cst_38 = arith.constant dense<0.000000e+00> : vector<2x2xf32>
    %200 = tpu.matmul %197, %198, %cst_38 {dimension_numbers = #tpu.dot_dimension_numbers<[1], [1], [0], [0], [0, 0, 1, 0], [], []>} : vector<2x8xf32>, vector<2x8xf32>, vector<2x2xf32> -> vector<2x2xf32>
    %cst_39 = arith.constant dense<0xFF800000> : vector<2xf32>
    %201 = vector.multi_reduction <maximumf>, %200, %cst_39 [1] : vector<2x2xf32> to vector<2xf32>
    %202 = vector.shape_cast %201 : vector<2xf32> to vector<2x1xf32>
    %203 = vector.broadcast %202 : vector<2x1xf32> to vector<2x2xf32>
    %204 = arith.subf %200, %203 : vector<2x2xf32>
    %205 = math.exp %204 : vector<2x2xf32>
    %cst_40 = arith.constant dense<0.000000e+00> : vector<2xf32>
    %206 = vector.multi_reduction <add>, %205, %cst_40 [1] : vector<2x2xf32> to vector<2xf32>
    %207 = vector.shape_cast %206 : vector<2xf32> to vector<2x1xf32>
    %208 = vector.broadcast %207 : vector<2x1xf32> to vector<2x2xf32>
    %209 = arith.divf %205, %208 : vector<2x2xf32>
    %cst_41 = arith.constant dense<0.000000e+00> : vector<2x8xf32>
    %210 = tpu.matmul %209, %199, %cst_41 {dimension_numbers = #tpu.dot_dimension_numbers<[1], [0], [0], [1], [0, 0, 1, 1], [], []>} : vector<2x2xf32>, vector<2x8xf32>, vector<2x8xf32> -> vector<2x8xf32>
    %211 = vector.extract_strided_slice %190 {offsets = [0, 8], sizes = [2, 8], strides = [1, 1]} : vector<2x32xf32> to vector<2x8xf32>
    %212 = vector.extract_strided_slice %193 {offsets = [0, 8], sizes = [2, 8], strides = [1, 1]} : vector<2x32xf32> to vector<2x8xf32>
    %213 = vector.extract_strided_slice %196 {offsets = [0, 8], sizes = [2, 8], strides = [1, 1]} : vector<2x32xf32> to vector<2x8xf32>
    %cst_42 = arith.constant dense<0.000000e+00> : vector<2x2xf32>
    %214 = tpu.matmul %211, %212, %cst_42 {dimension_numbers = #tpu.dot_dimension_numbers<[1], [1], [0], [0], [0, 0, 1, 0], [], []>} : vector<2x8xf32>, vector<2x8xf32>, vector<2x2xf32> -> vector<2x2xf32>
    %cst_43 = arith.constant dense<0xFF800000> : vector<2xf32>
    %215 = vector.multi_reduction <maximumf>, %214, %cst_43 [1] : vector<2x2xf32> to vector<2xf32>
    %216 = vector.shape_cast %215 : vector<2xf32> to vector<2x1xf32>
    %217 = vector.broadcast %216 : vector<2x1xf32> to vector<2x2xf32>
    %218 = arith.subf %214, %217 : vector<2x2xf32>
    %219 = math.exp %218 : vector<2x2xf32>
    %cst_44 = arith.constant dense<0.000000e+00> : vector<2xf32>
    %220 = vector.multi_reduction <add>, %219, %cst_44 [1] : vector<2x2xf32> to vector<2xf32>
    %221 = vector.shape_cast %220 : vector<2xf32> to vector<2x1xf32>
    %222 = vector.broadcast %221 : vector<2x1xf32> to vector<2x2xf32>
    %223 = arith.divf %219, %222 : vector<2x2xf32>
    %cst_45 = arith.constant dense<0.000000e+00> : vector<2x8xf32>
    %224 = tpu.matmul %223, %213, %cst_45 {dimension_numbers = #tpu.dot_dimension_numbers<[1], [0], [0], [1], [0, 0, 1, 1], [], []>} : vector<2x2xf32>, vector<2x8xf32>, vector<2x8xf32> -> vector<2x8xf32>
    %225 = vector.extract_strided_slice %190 {offsets = [0, 16], sizes = [2, 8], strides = [1, 1]} : vector<2x32xf32> to vector<2x8xf32>
    %226 = vector.extract_strided_slice %193 {offsets = [0, 16], sizes = [2, 8], strides = [1, 1]} : vector<2x32xf32> to vector<2x8xf32>
    %227 = vector.extract_strided_slice %196 {offsets = [0, 16], sizes = [2, 8], strides = [1, 1]} : vector<2x32xf32> to vector<2x8xf32>
    %cst_46 = arith.constant dense<0.000000e+00> : vector<2x2xf32>
    %228 = tpu.matmul %225, %226, %cst_46 {dimension_numbers = #tpu.dot_dimension_numbers<[1], [1], [0], [0], [0, 0, 1, 0], [], []>} : vector<2x8xf32>, vector<2x8xf32>, vector<2x2xf32> -> vector<2x2xf32>
    %cst_47 = arith.constant dense<0xFF800000> : vector<2xf32>
    %229 = vector.multi_reduction <maximumf>, %228, %cst_47 [1] : vector<2x2xf32> to vector<2xf32>
    %230 = vector.shape_cast %229 : vector<2xf32> to vector<2x1xf32>
    %231 = vector.broadcast %230 : vector<2x1xf32> to vector<2x2xf32>
    %232 = arith.subf %228, %231 : vector<2x2xf32>
    %233 = math.exp %232 : vector<2x2xf32>
    %cst_48 = arith.constant dense<0.000000e+00> : vector<2xf32>
    %234 = vector.multi_reduction <add>, %233, %cst_48 [1] : vector<2x2xf32> to vector<2xf32>
    %235 = vector.shape_cast %234 : vector<2xf32> to vector<2x1xf32>
    %236 = vector.broadcast %235 : vector<2x1xf32> to vector<2x2xf32>
    %237 = arith.divf %233, %236 : vector<2x2xf32>
    %cst_49 = arith.constant dense<0.000000e+00> : vector<2x8xf32>
    %238 = tpu.matmul %237, %227, %cst_49 {dimension_numbers = #tpu.dot_dimension_numbers<[1], [0], [0], [1], [0, 0, 1, 1], [], []>} : vector<2x2xf32>, vector<2x8xf32>, vector<2x8xf32> -> vector<2x8xf32>
    %239 = vector.extract_strided_slice %190 {offsets = [0, 24], sizes = [2, 8], strides = [1, 1]} : vector<2x32xf32> to vector<2x8xf32>
    %240 = vector.extract_strided_slice %193 {offsets = [0, 24], sizes = [2, 8], strides = [1, 1]} : vector<2x32xf32> to vector<2x8xf32>
    %241 = vector.extract_strided_slice %196 {offsets = [0, 24], sizes = [2, 8], strides = [1, 1]} : vector<2x32xf32> to vector<2x8xf32>
    %cst_50 = arith.constant dense<0.000000e+00> : vector<2x2xf32>
    %242 = tpu.matmul %239, %240, %cst_50 {dimension_numbers = #tpu.dot_dimension_numbers<[1], [1], [0], [0], [0, 0, 1, 0], [], []>} : vector<2x8xf32>, vector<2x8xf32>, vector<2x2xf32> -> vector<2x2xf32>
    %cst_51 = arith.constant dense<0xFF800000> : vector<2xf32>
    %243 = vector.multi_reduction <maximumf>, %242, %cst_51 [1] : vector<2x2xf32> to vector<2xf32>
    %244 = vector.shape_cast %243 : vector<2xf32> to vector<2x1xf32>
    %245 = vector.broadcast %244 : vector<2x1xf32> to vector<2x2xf32>
    %246 = arith.subf %242, %245 : vector<2x2xf32>
    %247 = math.exp %246 : vector<2x2xf32>
    %cst_52 = arith.constant dense<0.000000e+00> : vector<2xf32>
    %248 = vector.multi_reduction <add>, %247, %cst_52 [1] : vector<2x2xf32> to vector<2xf32>
    %249 = vector.shape_cast %248 : vector<2xf32> to vector<2x1xf32>
    %250 = vector.broadcast %249 : vector<2x1xf32> to vector<2x2xf32>
    %251 = arith.divf %247, %250 : vector<2x2xf32>
    %cst_53 = arith.constant dense<0.000000e+00> : vector<2x8xf32>
    %252 = tpu.matmul %251, %241, %cst_53 {dimension_numbers = #tpu.dot_dimension_numbers<[1], [0], [0], [1], [0, 0, 1, 1], [], []>} : vector<2x2xf32>, vector<2x8xf32>, vector<2x8xf32> -> vector<2x8xf32>
    %253 = tpu.concatenate %210, %224, %238, %252 in 1 : vector<2x8xf32>, vector<2x8xf32>, vector<2x8xf32>, vector<2x8xf32> -> vector<2x32xf32>
    %cst_54 = arith.constant dense<0.000000e+00> : vector<2x32xf32>
    %254 = tpu.matmul %253, %183, %cst_54 {dimension_numbers = #tpu.dot_dimension_numbers<[1], [0], [0], [1], [0, 0, 1, 1], [], []>} : vector<2x32xf32>, vector<32x32xf32>, vector<2x32xf32> -> vector<2x32xf32>
    %255 = vector.broadcast %187 : vector<1x32xf32> to vector<2x32xf32>
    %256 = arith.addf %254, %255 : vector<2x32xf32>
    %c0_55 = arith.constant 0 : index
    %c0_56 = arith.constant 0 : index
    %257 = vector.load %arg5[%c0_55, %c0_56] : memref<2x32xf32, #tpu.memory_space<vmem>>, vector<2x32xf32>
    tpu.vector_store %arg5[%c0_55, %c0_56], %256 {strides = array<i32>} : memref<2x32xf32, #tpu.memory_space<vmem>>, vector<2x32xf32>,
    return
  }
}

</mosaic_0001>

<llo_original>
// kernel: tpu_custom_call.1
$region0: #{tpu_custom_call.1}
  #allocation0 [shape = 'u32[]', space=smem, size = 0x4, offset = 0x4, fixed_abs, tag = 'smem constant byte address 0x4 - core index']
  #allocation1 [shape = 'u32[144,128]{1,0:T(1,128)}', space=vmem, size = 0x12000, scoped, tag = 'internal scratch']
  %s0 = inlined_call_operand.vmem [shape: f32[16,4], index: 0, kind: input, shape index: {}]
  %s1 = inlined_call_operand.hbm [shape: f32[4,32,128], index: 1, kind: input, shape index: {}]
  %s2 = inlined_call_operand.vmem [shape: f32[2,128], index: 2, kind: input, shape index: {}]
  %s3 = inlined_call_operand.hbm [shape: f32[4,32,32], index: 3, kind: input, shape index: {}]
  %s4 = inlined_call_operand.vmem [shape: f32[4,32], index: 4, kind: input, shape index: {}]
  %s5 = inlined_call_operand.hbm [shape: f32[2,32], index: 5, kind: output, shape index: {}]
  %s6 = sld [smem:[#allocation0]]
  $region38: #{tpu_custom_call.1} parent=0
    _
  %s8 = ssub.s32 1, %s6
  %s9 = scalar_select 0, %s8, %s6
  $region1: #{tpu_custom_call.1} parent=0
    #allocation2 [shape = 'u8[65536]{0}', space=vmem, size = 0x10000, scoped, tag = 'input window, operand 1, single buffered']
    #allocation3 [shape = 's32[1]{0}', space=sflag, size = 0x4, scoped, tag = 'scoped memory for tpu_custom_call.1']
    #allocation4 [shape = 's32[1]{0}', space=sflag, size = 0x4, scoped, tag = 'scoped memory for tpu_custom_call.1']
    #allocation5 [shape = 'u8[65536]{0}', space=vmem, size = 0x10000, scoped, tag = 'input window, operand 3, single buffered']
    #allocation6 [shape = 's32[1]{0}', space=sflag, size = 0x4, scoped, tag = 'scoped memory for tpu_custom_call.1']
    #allocation7 [shape = 'u8[1024]{0}', space=vmem, size = 0x400, scoped, tag = 'output window, operand 0, single buffered']
    %10 = vsyncpa [#allocation3], 0
    %11 = vsyncpa [#allocation6], 0
    %12 = vsyncpa [#allocation4], 0
    // Predicated region
    $region2: #{tpu_custom_call.1} parent=1 // pred_check
      _
    $region3: #{tpu_custom_call.1} parent=1 // pred_check_branch
      %14 = sbr.rel (0) target = $region5
    $region4: #{tpu_custom_call.1} parent=1 // pred_region
      _
    $region5: #{tpu_custom_call.1} parent=1 // pred_fallthru
      _
    // Predicated region
    $region6: #{tpu_custom_call.1} parent=1 // pred_check
      _
    $region7: #{tpu_custom_call.1} parent=1 // pred_check_branch
      %16 = sbr.rel (0) target = $region9
    $region8: #{tpu_custom_call.1} parent=1 // pred_region
      %s18 = ssub.s32 2048, 2048
      %19 = vsyncadd [#allocation3], %s18
      %s20 = sshll.u32 [#allocation2], 4
      %s21 = int_to_ptr.vmem [resolvable:$true] %s20
      %26 = dma.hbm_to_vmem [thread:$0]  %s1, 2048, %s21, [#allocation3], 128, 128, 8
    $region9: #{tpu_custom_call.1} parent=1 // pred_fallthru
      _
    // Predicated region
    $region10: #{tpu_custom_call.1} parent=1 // pred_check
      _
    $region11: #{tpu_custom_call.1} parent=1 // pred_check_branch
      %28 = sbr.rel (0) target = $region13
    $region12: #{tpu_custom_call.1} parent=1 // pred_region
      _
    $region13: #{tpu_custom_call.1} parent=1 // pred_fallthru
      _
    // Predicated region
    $region14: #{tpu_custom_call.1} parent=1 // pred_check
      _
    $region15: #{tpu_custom_call.1} parent=1 // pred_check_branch
      %30 = sbr.rel (0) target = $region17
    $region16: #{tpu_custom_call.1} parent=1 // pred_region
      %s32 = ssub.s32 2048, 2048
      %33 = vsyncadd [#allocation6], %s32
      %s34 = sshll.u32 [#allocation5], 4
      %s35 = int_to_ptr.vmem [resolvable:$true] %s34
      %40 = dma.hbm_to_vmem [thread:$0]  %s3, 2048, %s35, [#allocation6], 128, 128, 8
    $region17: #{tpu_custom_call.1} parent=1 // pred_fallthru
      _
    // Predicated region
    $region18: #{tpu_custom_call.1} parent=1 // pred_check
      _
    $region19: #{tpu_custom_call.1} parent=1 // pred_check_branch
      %42 = sbr.rel (0) target = $region21
    $region20: #{tpu_custom_call.1} parent=1 // pred_region
      _
    $region21: #{tpu_custom_call.1} parent=1 // pred_fallthru
      _
    // Predicated region
    $region22: #{tpu_custom_call.1} parent=1 // pred_check
      _
    $region23: #{tpu_custom_call.1} parent=1 // pred_check_branch
      %44 = sbr.rel (0) target = $region25
    $region24: #{tpu_custom_call.1} parent=1 // pred_region
      %45 = dma.done [#allocation3], 2048
    $region25: #{tpu_custom_call.1} parent=1 // pred_fallthru
      _
    // Predicated region
    $region26: #{tpu_custom_call.1} parent=1 // pred_check
      _
    $region27: #{tpu_custom_call.1} parent=1 // pred_check_branch
      %47 = sbr.rel (0) target = $region29
    $region28: #{tpu_custom_call.1} parent=1 // pred_region
      %48 = dma.done [#allocation6], 2048
    $region29: #{tpu_custom_call.1} parent=1 // pred_fallthru
      _
    %v49 = vld [vmem:[#allocation2] sm:$0xff]
    %v50 = vld [vmem:[#allocation2 + $0x20] sm:$0xff]
    %v51 = vld [vmem:[#allocation2 + $0x28] sm:$0xff]
    %v52 = vld [vmem:[#allocation2 + $0x30] sm:$0xff]
    %v53 = vld [vmem:[#allocation2 + $0x38] sm:$0xff]
    %v54 = vld [vmem:[#allocation2 + $0x40] sm:$0xff]
    %v55 = vld [vmem:[#allocation2 + $0x48] sm:$0xff]
    %v56 = vld [vmem:[#allocation2 + $0x50] sm:$0xff]
    %v57 = vld [vmem:[#allocation2 + $0x58] sm:$0xff]
    %v58 = vld [vmem:[#allocation2 + $0x60] sm:$0xff]
    %v59 = vld [vmem:[#allocation2 + $0x68] sm:$0xff]
    %v60 = vld [vmem:[#allocation2 + $0x70] sm:$0xff]
    %v61 = vld [vmem:[#allocation2 + $0x78] sm:$0xff]
    %v62 = vld [vmem:[%s2] sm:$0x3]
    %v63 = vld [vmem:[%s0] sm:$0xff]
    %v64 = vld [vmem:[%s0 + $0x8] sm:$0xff]
    %v65 = vlaneseq
    %v66 = vshrl.u32 %v65, 7
    %v67 = vsub.s32 0, %v66
    %v68 = vrot.slane %v62, %v67
    %vm69 = vcmask 31744
    %v71 = vsel %vm69, %v63, 0
    %v74 = vsel %vm69, %v64, 0
    %vm76 = vcmask 1043456
    %v78 = vsel %vm76, %v49, 0
    %80 = vmatprep.subr.mxu0 0.0
    %81 = vmatpush1.msra.mxu0 %v78
    %82 = vmatprep.subr.mxu0 0.0
    %83 = vmatpush1.msra.mxu0 0.0
    %84 = vmatprep.subr.mxu0 0.0
    %85 = vmatpush1.msra.mxu0 0.0
    %86 = vmatprep.subr.mxu0 0.0
    %87 = vmatpush1.msra.mxu0 0.0
    %88 = vmatprep.subr.mxu0 0.0
    %89 = vmatpush1.msra.mxu0 0.0
    %90 = vmatprep.subr.mxu0 0.0
    %91 = vmatpush1.msra.mxu0 0.0
    %92 = vmatprep.subr.mxu0 0.0
    %93 = vmatpush1.msra.mxu0 0.0
    %94 = vmatprep.subr.mxu0 0.0
    %95 = vmatpush1.msra.mxu0 0.0
    %96 = vmatprep.subr.mxu0 0.0
    %97 = vmatpush1.msra.mxu0 0.0
    %98 = vmatprep.subr.mxu0 0.0
    %99 = vmatpush1.msra.mxu0 0.0
    %100 = vmatprep.subr.mxu0 0.0
    %101 = vmatpush1.msra.mxu0 0.0
    %102 = vmatprep.subr.mxu0 0.0
    %103 = vmatpush1.msra.mxu0 0.0
    %104 = vmatprep.subr.mxu0 0.0
    %105 = vmatpush1.msra.mxu0 0.0
    %106 = vmatprep.subr.mxu0 0.0
    %107 = vmatpush1.msra.mxu0 0.0
    %108 = vmatprep.subr.mxu0 0.0
    %109 = vmatpush1.msra.mxu0 0.0
    %110 = vmatprep.subr.mxu0 0.0
    %111 = vmatpush1.msra.mxu0 0.0
    %112 = vmatprep.subr.mxu0 0.0
    %113 = vmatpush1.msra.mxu0 0.0
    %114 = vmatprep.subr.mxu0 0.0
    %115 = vmatpush1.msra.mxu0 0.0
    %116 = vmatprep.subr.mxu0 0.0
    %117 = vmatpush1.msra.mxu0 0.0
    %118 = vmatprep.subr.mxu0 0.0
    %119 = vmatpush1.msra.mxu0 0.0
    %120 = vmatprep.subr.mxu0 0.0
    %121 = vmatpush1.msra.mxu0 0.0
    %122 = vmatprep.subr.mxu0 0.0
    %123 = vmatpush1.msra.mxu0 0.0
    %124 = vmatprep.subr.mxu0 0.0
    %125 = vmatpush1.msra.mxu0 0.0
    %126 = vmatprep.subr.mxu0 0.0
    %127 = vmatpush1.msra.mxu0 0.0
    %128 = vmatprep.subr.mxu0 0.0
    %129 = vmatpush1.msra.mxu0 0.0
    %130 = vmatprep.subr.mxu0 0.0
    %131 = vmatpush1.msra.mxu0 0.0
    %132 = vmatprep.subr.mxu0 0.0
    %133 = vmatpush1.msra.mxu0 0.0
    %134 = vmatprep.subr.mxu0 0.0
    %135 = vmatpush1.msra.mxu0 0.0
    %136 = vmatprep.subr.mxu0 0.0
    %137 = vmatpush1.msra.mxu0 0.0
    %138 = vmatprep.subr.mxu0 0.0
    %139 = vmatpush1.msra.mxu0 0.0
    %140 = vmatprep.subr.mxu0 0.0
    %141 = vmatpush1.msra.mxu0 0.0
    %142 = vmatprep.subr.mxu0 0.0
    %143 = vmatpush1.msra.mxu0 0.0
    %144 = vmatprep.mubr.f32.mxu0 0.0
    %145 = vmatmul.mubr.f32.gmra.mrb[0].mxu0 %v71
    %v146 = vpop.f32.mrb[0].mxu0
    %v147 = vadd.f32 %v68, %v146
    %v148 = vpop.f32.mrb[0].mxu0
    %149 = vmatprep.mubr.f32.mxu0 0.0
    %150 = vmatmul.mubr.f32.gmra.mrb[0].mxu0 %v74
    %v151 = vpop.f32.mrb[0].mxu0
    %v152 = vadd.f32 %v68, %v151
    %v153 = vpop.f32.mrb[0].mxu0
    %154 = vdwg.mxu0
    %vm155 = vcmask 261120
    %v157 = vsel %vm155, 0.0, 0
    %159 = vmatprep.subr.mxu0 0.0
    %160 = vmatpush1.msra.mxu0 %v50
    %161 = vmatprep.subr.mxu0 0.0
    %162 = vmatpush1.msra.mxu0 %v51
    %163 = vmatprep.subr.mxu0 0.0
    %164 = vmatpush1.msra.mxu0 %v52
    %165 = vmatprep.subr.mxu0 0.0
    %166 = vmatpush1.msra.mxu0 %v53
    %167 = vmatprep.subr.mxu0 0.0
    %168 = vmatpush1.msra.mxu0 0.0
    %169 = vmatprep.subr.mxu0 0.0
    %170 = vmatpush1.msra.mxu0 0.0
    %171 = vmatprep.subr.mxu0 0.0
    %172 = vmatpush1.msra.mxu0 0.0
    %173 = vmatprep.subr.mxu0 0.0
    %174 = vmatpush1.msra.mxu0 0.0
    %175 = vmatprep.subr.mxu0 0.0
    %176 = vmatpush1.msra.mxu0 0.0
    %177 = vmatprep.subr.mxu0 0.0
    %178 = vmatpush1.msra.mxu0 0.0
    %179 = vmatprep.subr.mxu0 0.0
    %180 = vmatpush1.msra.mxu0 0.0
    %181 = vmatprep.subr.mxu0 0.0
    %182 = vmatpush1.msra.mxu0 0.0
    %183 = vmatprep.subr.mxu0 0.0
    %184 = vmatpush1.msra.mxu0 0.0
    %185 = vmatprep.subr.mxu0 0.0
    %186 = vmatpush1.msra.mxu0 0.0
    %187 = vmatprep.subr.mxu0 0.0
    %188 = vmatpush1.msra.mxu0 0.0
    %189 = vmatprep.subr.mxu0 0.0
    %190 = vmatpush1.msra.mxu0 0.0
    %191 = vmatprep.subr.mxu0 0.0
    %192 = vmatpush1.msra.mxu0 0.0
    %193 = vmatprep.subr.mxu0 0.0
    %194 = vmatpush1.msra.mxu0 0.0
    %195 = vmatprep.subr.mxu0 0.0
    %196 = vmatpush1.msra.mxu0 0.0
    %197 = vmatprep.subr.mxu0 0.0
    %198 = vmatpush1.msra.mxu0 0.0
    %199 = vmatprep.subr.mxu0 0.0
    %200 = vmatpush1.msra.mxu0 0.0
    %201 = vmatprep.subr.mxu0 0.0
    %202 = vmatpush1.msra.mxu0 0.0
    %203 = vmatprep.subr.mxu0 0.0
    %204 = vmatpush1.msra.mxu0 0.0
    %205 = vmatprep.subr.mxu0 0.0
    %206 = vmatpush1.msra.mxu0 0.0
    %207 = vmatprep.subr.mxu0 0.0
    %208 = vmatpush1.msra.mxu0 0.0
    %209 = vmatprep.subr.mxu0 0.0
    %210 = vmatpush1.msra.mxu0 0.0
    %211 = vmatprep.subr.mxu0 0.0
    %212 = vmatpush1.msra.mxu0 0.0
    %213 = vmatprep.subr.mxu0 0.0
    %214 = vmatpush1.msra.mxu0 0.0
    %215 = vmatprep.subr.mxu0 0.0
    %216 = vmatpush1.msra.mxu0 0.0
    %217 = vmatprep.subr.mxu0 0.0
    %218 = vmatpush1.msra.mxu0 0.0
    %219 = vmatprep.subr.mxu0 0.0
    %220 = vmatpush1.msra.mxu0 0.0
    %221 = vmatprep.subr.mxu0 0.0
    %222 = vmatpush1.msra.mxu0 0.0
    %223 = vmatprep.mubr.f32.mxu0 0.0
    %224 = vmatmul.mubr.f32.gmra.mrb[0].mxu0 %v157
    %v225 = vpop.f32.mrb[0].mxu0
    %v226 = vadd.f32 0.0, %v225
    %v227 = vpop.f32.mrb[0].mxu0
    %228 = vdwg.mxu0
    %v229 = vadd.f32 %v147, %v226
    %v230 = vxor.u32 %v229, 2147483648
    %v231 = vmul.f32 %v230, 1.442695
    %v232 = vpow.pop %v231
    %v233 = vadd.f32 %v232, 1.0
    %v234 = vrcp.pop %v233
    %v235 = vmul.f32 1.0, %v234
    %v236 = vtanh.pop %v229
    %v237 = vmul.f32 %v235, 0.0
    %239 = vrot.lane.b32.xlu0 %v236, 64
    %v240 = vpop.permute.xlu0 %239
    %v242 = vmul.f32 %v235, %v240
    %244 = vrot.lane.b32.xlu0 %v242, 32
    %v245 = vpop.permute.xlu0 %244
    %v247 = vadd.f32 %v237, %v245
    %v248 = vtanh.pop %v247
    %250 = vrot.lane.b32.xlu0 %v248, 64
    %v251 = vpop.permute.xlu0 %250
    %v253 = vmul.f32 %v235, %v251
    %254 = vmatprep.subr.mxu0 0.0
    %255 = vmatpush1.msra.mxu0 %v58
    %256 = vmatprep.subr.mxu0 0.0
    %257 = vmatpush1.msra.mxu0 %v59
    %258 = vmatprep.subr.mxu0 0.0
    %259 = vmatpush1.msra.mxu0 %v60
    %260 = vmatprep.subr.mxu0 0.0
    %261 = vmatpush1.msra.mxu0 %v61
    %262 = vmatprep.subr.mxu0 0.0
    %263 = vmatpush1.msra.mxu0 0.0
    %264 = vmatprep.subr.mxu0 0.0
    %265 = vmatpush1.msra.mxu0 0.0
    %266 = vmatprep.subr.mxu0 0.0
    %267 = vmatpush1.msra.mxu0 0.0
    %268 = vmatprep.subr.mxu0 0.0
    %269 = vmatpush1.msra.mxu0 0.0
    %270 = vmatprep.subr.mxu0 0.0
    %271 = vmatpush1.msra.mxu0 0.0
    %272 = vmatprep.subr.mxu0 0.0
    %273 = vmatpush1.msra.mxu0 0.0
    %274 = vmatprep.subr.mxu0 0.0
    %275 = vmatpush1.msra.mxu0 0.0
    %276 = vmatprep.subr.mxu0 0.0
    %277 = vmatpush1.msra.mxu0 0.0
    %278 = vmatprep.subr.mxu0 0.0
    %279 = vmatpush1.msra.mxu0 0.0
    %280 = vmatprep.subr.mxu0 0.0
    %281 = vmatpush1.msra.mxu0 0.0
    %282 = vmatprep.subr.mxu0 0.0
    %283 = vmatpush1.msra.mxu0 0.0
    %284 = vmatprep.subr.mxu0 0.0
    %285 = vmatpush1.msra.mxu0 0.0
    %286 = vmatprep.subr.mxu0 0.0
    %287 = vmatpush1.msra.mxu0 0.0
    %288 = vmatprep.subr.mxu0 0.0
    %289 = vmatpush1.msra.mxu0 0.0
    %290 = vmatprep.subr.mxu0 0.0
    %291 = vmatpush1.msra.mxu0 0.0
    %292 = vmatprep.subr.mxu0 0.0
    %293 = vmatpush1.msra.mxu0 0.0
    %294 = vmatprep.subr.mxu0 0.0
    %295 = vmatpush1.msra.mxu0 0.0
    %296 = vmatprep.subr.mxu0 0.0
    %297 = vmatpush1.msra.mxu0 0.0
    %298 = vmatprep.subr.mxu0 0.0
    %299 = vmatpush1.msra.mxu0 0.0
    %300 = vmatprep.subr.mxu0 0.0
    %301 = vmatpush1.msra.mxu0 0.0
    %302 = vmatprep.subr.mxu0 0.0
    %303 = vmatpush1.msra.mxu0 0.0
    %304 = vmatprep.subr.mxu0 0.0
    %305 = vmatpush1.msra.mxu0 0.0
    %306 = vmatprep.subr.mxu0 0.0
    %307 = vmatpush1.msra.mxu0 0.0
    %308 = vmatprep.subr.mxu0 0.0
    %309 = vmatpush1.msra.mxu0 0.0
    %310 = vmatprep.subr.mxu0 0.0
    %311 = vmatpush1.msra.mxu0 0.0
    %312 = vmatprep.subr.mxu0 0.0
    %313 = vmatpush1.msra.mxu0 0.0
    %314 = vmatprep.subr.mxu0 0.0
    %315 = vmatpush1.msra.mxu0 0.0
    %316 = vmatprep.subr.mxu0 0.0
    %317 = vmatpush1.msra.mxu0 0.0
    %318 = vmatprep.mubr.f32.mxu0 0.0
    %319 = vmatmul.mubr.f32.gmra.mrb[0].mxu0 %v157
    %v320 = vpop.f32.mrb[0].mxu0
    %v321 = vadd.f32 0.0, %v320
    %v322 = vpop.f32.mrb[0].mxu0
    %323 = vdwg.mxu0
    %325 = vrot.lane.b32.xlu0 %v253, 32
    %v326 = vpop.permute.xlu0 %325
    %v327 = vsel %vm155, %v326, 0
    %329 = vmatprep.subr.mxu0 0.0
    %330 = vmatpush1.msra.mxu0 %v54
    %331 = vmatprep.subr.mxu0 0.0
    %332 = vmatpush1.msra.mxu0 %v55
    %333 = vmatprep.subr.mxu0 0.0
    %334 = vmatpush1.msra.mxu0 %v56
    %335 = vmatprep.subr.mxu0 0.0
    %336 = vmatpush1.msra.mxu0 %v57
    %337 = vmatprep.subr.mxu0 0.0
    %338 = vmatpush1.msra.mxu0 0.0
    %339 = vmatprep.subr.mxu0 0.0
    %340 = vmatpush1.msra.mxu0 0.0
    %341 = vmatprep.subr.mxu0 0.0
    %342 = vmatpush1.msra.mxu0 0.0
    %343 = vmatprep.subr.mxu0 0.0
    %344 = vmatpush1.msra.mxu0 0.0
    %345 = vmatprep.subr.mxu0 0.0
    %346 = vmatpush1.msra.mxu0 0.0
    %347 = vmatprep.subr.mxu0 0.0
    %348 = vmatpush1.msra.mxu0 0.0
    %349 = vmatprep.subr.mxu0 0.0
    %350 = vmatpush1.msra.mxu0 0.0
    %351 = vmatprep.subr.mxu0 0.0
    %352 = vmatpush1.msra.mxu0 0.0
    %353 = vmatprep.subr.mxu0 0.0
    %354 = vmatpush1.msra.mxu0 0.0
    %355 = vmatprep.subr.mxu0 0.0
    %356 = vmatpush1.msra.mxu0 0.0
    %357 = vmatprep.subr.mxu0 0.0
    %358 = vmatpush1.msra.mxu0 0.0
    %359 = vmatprep.subr.mxu0 0.0
    %360 = vmatpush1.msra.mxu0 0.0
    %361 = vmatprep.subr.mxu0 0.0
    %362 = vmatpush1.msra.mxu0 0.0
    %363 = vmatprep.subr.mxu0 0.0
    %364 = vmatpush1.msra.mxu0 0.0
    %365 = vmatprep.subr.mxu0 0.0
    %366 = vmatpush1.msra.mxu0 0.0
    %367 = vmatprep.subr.mxu0 0.0
    %368 = vmatpush1.msra.mxu0 0.0
    %369 = vmatprep.subr.mxu0 0.0
    %370 = vmatpush1.msra.mxu0 0.0
    %371 = vmatprep.subr.mxu0 0.0
    %372 = vmatpush1.msra.mxu0 0.0
    %373 = vmatprep.subr.mxu0 0.0
    %374 = vmatpush1.msra.mxu0 0.0
    %375 = vmatprep.subr.mxu0 0.0
    %376 = vmatpush1.msra.mxu0 0.0
    %377 = vmatprep.subr.mxu0 0.0
    %378 = vmatpush1.msra.mxu0 0.0
    %379 = vmatprep.subr.mxu0 0.0
    %380 = vmatpush1.msra.mxu0 0.0
    %381 = vmatprep.subr.mxu0 0.0
    %382 = vmatpush1.msra.mxu0 0.0
    %383 = vmatprep.subr.mxu0 0.0
    %384 = vmatpush1.msra.mxu0 0.0
    %385 = vmatprep.subr.mxu0 0.0
    %386 = vmatpush1.msra.mxu0 0.0
    %387 = vmatprep.subr.mxu0 0.0
    %388 = vmatpush1.msra.mxu0 0.0
    %389 = vmatprep.subr.mxu0 0.0
    %390 = vmatpush1.msra.mxu0 0.0
    %391 = vmatprep.subr.mxu0 0.0
    %392 = vmatpush1.msra.mxu0 0.0
    %393 = vmatprep.mubr.f32.mxu0 0.0
    %394 = vmatmul.mubr.f32.gmra.mrb[0].mxu0 %v327
    %v395 = vpop.f32.mrb[0].mxu0
    %v396 = vadd.f32 %v321, %v395
    %v397 = vpop.f32.mrb[0].mxu0
    %398 = vdwg.mxu0
    %v399 = vlaneseq
    %v400 = vshrl.u32 %v399, 7
    %v401 = vsub.s32 1, %v400
    %v402 = vrot.slane %v62, %v401
    %v403 = vadd.f32 %v396, %v402
    %v404 = vxor.u32 %v403, 2147483648
    %v405 = vmul.f32 %v404, 1.442695
    %v406 = vpow.pop %v405
    %v407 = vadd.f32 %v406, 1.0
    %v408 = vrcp.pop %v407
    %v409 = vmul.f32 1.0, %v408
    %v410 = vtanh.pop %v403
    %v411 = vmul.f32 %v409, 0.0
    %413 = vrot.lane.b32.xlu0 %v410, 64
    %v414 = vpop.permute.xlu0 %413
    %v416 = vmul.f32 %v409, %v414
    %418 = vrot.lane.b32.xlu0 %v416, 32
    %v419 = vpop.permute.xlu0 %418
    %v421 = vadd.f32 %v411, %v419
    %v422 = vtanh.pop %v421
    %424 = vrot.lane.b32.xlu0 %v422, 64
    %v425 = vpop.permute.xlu0 %424
    %v427 = vmul.f32 %v409, %v425
    %428 = vmatprep.subr.mxu0 0.0
    %429 = vmatpush1.msra.mxu0 %v50
    %430 = vmatprep.subr.mxu0 0.0
    %431 = vmatpush1.msra.mxu0 %v51
    %432 = vmatprep.subr.mxu0 0.0
    %433 = vmatpush1.msra.mxu0 %v52
    %434 = vmatprep.subr.mxu0 0.0
    %435 = vmatpush1.msra.mxu0 %v53
    %436 = vmatprep.subr.mxu0 0.0
    %437 = vmatpush1.msra.mxu0 0.0
    %438 = vmatprep.subr.mxu0 0.0
    %439 = vmatpush1.msra.mxu0 0.0
    %440 = vmatprep.subr.mxu0 0.0
    %441 = vmatpush1.msra.mxu0 0.0
    %442 = vmatprep.subr.mxu0 0.0
    %443 = vmatpush1.msra.mxu0 0.0
    %444 = vmatprep.subr.mxu0 0.0
    %445 = vmatpush1.msra.mxu0 0.0
    %446 = vmatprep.subr.mxu0 0.0
    %447 = vmatpush1.msra.mxu0 0.0
    %448 = vmatprep.subr.mxu0 0.0
    %449 = vmatpush1.msra.mxu0 0.0
    %450 = vmatprep.subr.mxu0 0.0
    %451 = vmatpush1.msra.mxu0 0.0
    %452 = vmatprep.subr.mxu0 0.0
    %453 = vmatpush1.msra.mxu0 0.0
    %454 = vmatprep.subr.mxu0 0.0
    %455 = vmatpush1.msra.mxu0 0.0
    %456 = vmatprep.subr.mxu0 0.0
    %457 = vmatpush1.msra.mxu0 0.0
    %458 = vmatprep.subr.mxu0 0.0
    %459 = vmatpush1.msra.mxu0 0.0
    %460 = vmatprep.subr.mxu0 0.0
    %461 = vmatpush1.msra.mxu0 0.0
    %462 = vmatprep.subr.mxu0 0.0
    %463 = vmatpush1.msra.mxu0 0.0
    %464 = vmatprep.subr.mxu0 0.0
    %465 = vmatpush1.msra.mxu0 0.0
    %466 = vmatprep.subr.mxu0 0.0
    %467 = vmatpush1.msra.mxu0 0.0
    %468 = vmatprep.subr.mxu0 0.0
    %469 = vmatpush1.msra.mxu0 0.0
    %470 = vmatprep.subr.mxu0 0.0
    %471 = vmatpush1.msra.mxu0 0.0
    %472 = vmatprep.subr.mxu0 0.0
    %473 = vmatpush1.msra.mxu0 0.0
    %474 = vmatprep.subr.mxu0 0.0
    %475 = vmatpush1.msra.mxu0 0.0
    %476 = vmatprep.subr.mxu0 0.0
    %477 = vmatpush1.msra.mxu0 0.0
    %478 = vmatprep.subr.mxu0 0.0
    %479 = vmatpush1.msra.mxu0 0.0
    %480 = vmatprep.subr.mxu0 0.0
    %481 = vmatpush1.msra.mxu0 0.0
    %482 = vmatprep.subr.mxu0 0.0
    %483 = vmatpush1.msra.mxu0 0.0
    %484 = vmatprep.subr.mxu0 0.0
    %485 = vmatpush1.msra.mxu0 0.0
    %486 = vmatprep.subr.mxu0 0.0
    %487 = vmatpush1.msra.mxu0 0.0
    %488 = vmatprep.subr.mxu0 0.0
    %489 = vmatpush1.msra.mxu0 0.0
    %490 = vmatprep.subr.mxu0 0.0
    %491 = vmatpush1.msra.mxu0 0.0
    %492 = vmatprep.mubr.f32.mxu0 0.0
    %493 = vmatmul.mubr.f32.gmra.mrb[0].mxu0 %v327
    %v494 = vpop.f32.mrb[0].mxu0
    %v495 = vadd.f32 0.0, %v494
    %v496 = vpop.f32.mrb[0].mxu0
    %497 = vdwg.mxu0
    %v499 = vrot.slane %v495, 4
    %v501 = vadd.f32 %v147, %v499
    %v502 = vxor.u32 %v501, 2147483648
    %v503 = vmul.f32 %v502, 1.442695
    %v504 = vpow.pop %v503
    %v505 = vadd.f32 %v504, 1.0
    %v506 = vrcp.pop %v505
    %v507 = vmul.f32 1.0, %v506
    %v508 = vtanh.pop %v501
    %v510 = vrot.slane %v247, 4
    %v512 = vmul.f32 %v507, %v510
    %514 = vrot.lane.b32.xlu0 %v508, 64
    %v515 = vpop.permute.xlu0 %514
    %v517 = vmul.f32 %v507, %v515
    %519 = vrot.lane.b32.xlu0 %v517, 32
    %v520 = vpop.permute.xlu0 %519
    %v522 = vadd.f32 %v512, %v520
    %v523 = vtanh.pop %v522
    %525 = vrot.lane.b32.xlu0 %v523, 64
    %v526 = vpop.permute.xlu0 %525
    %v528 = vmul.f32 %v507, %v526
    %530 = vrot.lane.b32.xlu0 %v427, 32
    %v531 = vpop.permute.xlu0 %530
    %v532 = vsel %vm155, %v531, 0
    %534 = vmatprep.subr.mxu0 0.0
    %535 = vmatpush1.msra.mxu0 %v58
    %536 = vmatprep.subr.mxu0 0.0
    %537 = vmatpush1.msra.mxu0 %v59
    %538 = vmatprep.subr.mxu0 0.0
    %539 = vmatpush1.msra.mxu0 %v60
    %540 = vmatprep.subr.mxu0 0.0
    %541 = vmatpush1.msra.mxu0 %v61
    %542 = vmatprep.subr.mxu0 0.0
    %543 = vmatpush1.msra.mxu0 0.0
    %544 = vmatprep.subr.mxu0 0.0
    %545 = vmatpush1.msra.mxu0 0.0
    %546 = vmatprep.subr.mxu0 0.0
    %547 = vmatpush1.msra.mxu0 0.0
    %548 = vmatprep.subr.mxu0 0.0
    %549 = vmatpush1.msra.mxu0 0.0
    %550 = vmatprep.subr.mxu0 0.0
    %551 = vmatpush1.msra.mxu0 0.0
    %552 = vmatprep.subr.mxu0 0.0
    %553 = vmatpush1.msra.mxu0 0.0
    %554 = vmatprep.subr.mxu0 0.0
    %555 = vmatpush1.msra.mxu0 0.0
    %556 = vmatprep.subr.mxu0 0.0
    %557 = vmatpush1.msra.mxu0 0.0
    %558 = vmatprep.subr.mxu0 0.0
    %559 = vmatpush1.msra.mxu0 0.0
    %560 = vmatprep.subr.mxu0 0.0
    %561 = vmatpush1.msra.mxu0 0.0
    %562 = vmatprep.subr.mxu0 0.0
    %563 = vmatpush1.msra.mxu0 0.0
    %564 = vmatprep.subr.mxu0 0.0
    %565 = vmatpush1.msra.mxu0 0.0
    %566 = vmatprep.subr.mxu0 0.0
    %567 = vmatpush1.msra.mxu0 0.0
    %568 = vmatprep.subr.mxu0 0.0
    %569 = vmatpush1.msra.mxu0 0.0
    %570 = vmatprep.subr.mxu0 0.0
    %571 = vmatpush1.msra.mxu0 0.0
    %572 = vmatprep.subr.mxu0 0.0
    %573 = vmatpush1.msra.mxu0 0.0
    %574 = vmatprep.subr.mxu0 0.0
    %575 = vmatpush1.msra.mxu0 0.0
    %576 = vmatprep.subr.mxu0 0.0
    %577 = vmatpush1.msra.mxu0 0.0
    %578 = vmatprep.subr.mxu0 0.0
    %579 = vmatpush1.msra.mxu0 0.0
    %580 = vmatprep.subr.mxu0 0.0
    %581 = vmatpush1.msra.mxu0 0.0
    %582 = vmatprep.subr.mxu0 0.0
    %583 = vmatpush1.msra.mxu0 0.0
    %584 = vmatprep.subr.mxu0 0.0
    %585 = vmatpush1.msra.mxu0 0.0
    %586 = vmatprep.subr.mxu0 0.0
    %587 = vmatpush1.msra.mxu0 0.0
    %588 = vmatprep.subr.mxu0 0.0
    %589 = vmatpush1.msra.mxu0 0.0
    %590 = vmatprep.subr.mxu0 0.0
    %591 = vmatpush1.msra.mxu0 0.0
    %592 = vmatprep.subr.mxu0 0.0
    %593 = vmatpush1.msra.mxu0 0.0
    %594 = vmatprep.subr.mxu0 0.0
    %595 = vmatpush1.msra.mxu0 0.0
    %596 = vmatprep.subr.mxu0 0.0
    %597 = vmatpush1.msra.mxu0 0.0
    %598 = vmatprep.mubr.f32.mxu0 0.0
    %599 = vmatmul.mubr.f32.gmra.mrb[0].mxu0 %v532
    %v600 = vpop.f32.mrb[0].mxu0
    %v601 = vadd.f32 0.0, %v600
    %v602 = vpop.f32.mrb[0].mxu0
    %603 = vdwg.mxu0
    %v605 = vrot.slane %v528, 4
    %606 = vrot.lane.b32.xlu0 %v605, 32
    %v607 = vpop.permute.xlu0 %606
    %v608 = vsel %vm155, %v607, 0
    %610 = vmatprep.subr.mxu0 0.0
    %611 = vmatpush1.msra.mxu0 %v54
    %612 = vmatprep.subr.mxu0 0.0
    %613 = vmatpush1.msra.mxu0 %v55
    %614 = vmatprep.subr.mxu0 0.0
    %615 = vmatpush1.msra.mxu0 %v56
    %616 = vmatprep.subr.mxu0 0.0
    %617 = vmatpush1.msra.mxu0 %v57
    %618 = vmatprep.subr.mxu0 0.0
    %619 = vmatpush1.msra.mxu0 0.0
    %620 = vmatprep.subr.mxu0 0.0
    %621 = vmatpush1.msra.mxu0 0.0
    %622 = vmatprep.subr.mxu0 0.0
    %623 = vmatpush1.msra.mxu0 0.0
    %624 = vmatprep.subr.mxu0 0.0
    %625 = vmatpush1.msra.mxu0 0.0
    %626 = vmatprep.subr.mxu0 0.0
    %627 = vmatpush1.msra.mxu0 0.0
    %628 = vmatprep.subr.mxu0 0.0
    %629 = vmatpush1.msra.mxu0 0.0
    %630 = vmatprep.subr.mxu0 0.0
    %631 = vmatpush1.msra.mxu0 0.0
    %632 = vmatprep.subr.mxu0 0.0
    %633 = vmatpush1.msra.mxu0 0.0
    %634 = vmatprep.subr.mxu0 0.0
    %635 = vmatpush1.msra.mxu0 0.0
    %636 = vmatprep.subr.mxu0 0.0
    %637 = vmatpush1.msra.mxu0 0.0
    %638 = vmatprep.subr.mxu0 0.0
    %639 = vmatpush1.msra.mxu0 0.0
    %640 = vmatprep.subr.mxu0 0.0
    %641 = vmatpush1.msra.mxu0 0.0
    %642 = vmatprep.subr.mxu0 0.0
    %643 = vmatpush1.msra.mxu0 0.0
    %644 = vmatprep.subr.mxu0 0.0
    %645 = vmatpush1.msra.mxu0 0.0
    %646 = vmatprep.subr.mxu0 0.0
    %647 = vmatpush1.msra.mxu0 0.0
    %648 = vmatprep.subr.mxu0 0.0
    %649 = vmatpush1.msra.mxu0 0.0
    %650 = vmatprep.subr.mxu0 0.0
    %651 = vmatpush1.msra.mxu0 0.0
    %652 = vmatprep.subr.mxu0 0.0
    %653 = vmatpush1.msra.mxu0 0.0
    %654 = vmatprep.subr.mxu0 0.0
    %655 = vmatpush1.msra.mxu0 0.0
    %656 = vmatprep.subr.mxu0 0.0
    %657 = vmatpush1.msra.mxu0 0.0
    %658 = vmatprep.subr.mxu0 0.0
    %659 = vmatpush1.msra.mxu0 0.0
    %660 = vmatprep.subr.mxu0 0.0
    %661 = vmatpush1.msra.mxu0 0.0
    %662 = vmatprep.subr.mxu0 0.0
    %663 = vmatpush1.msra.mxu0 0.0
    %664 = vmatprep.subr.mxu0 0.0
    %665 = vmatpush1.msra.mxu0 0.0
    %666 = vmatprep.subr.mxu0 0.0
    %667 = vmatpush1.msra.mxu0 0.0
    %668 = vmatprep.subr.mxu0 0.0
    %669 = vmatpush1.msra.mxu0 0.0
    %670 = vmatprep.subr.mxu0 0.0
    %671 = vmatpush1.msra.mxu0 0.0
    %672 = vmatprep.subr.mxu0 0.0
    %673 = vmatpush1.msra.mxu0 0.0
    %674 = vmatprep.mubr.f32.mxu0 0.0
    %675 = vmatmul.mubr.f32.gmra.mrb[0].mxu0 %v608
    %v676 = vpop.f32.mrb[0].mxu0
    %v677 = vadd.f32 %v601, %v676
    %v678 = vpop.f32.mrb[0].mxu0
    %679 = vdwg.mxu0
    %v680 = vadd.f32 %v677, %v402
    %v681 = vxor.u32 %v680, 2147483648
    %v682 = vmul.f32 %v681, 1.442695
    %v683 = vpow.pop %v682
    %v684 = vadd.f32 %v683, 1.0
    %v685 = vrcp.pop %v684
    %v686 = vmul.f32 1.0, %v685
    %v687 = vtanh.pop %v680
    %v688 = vmul.f32 %v686, %v421
    %690 = vrot.lane.b32.xlu0 %v687, 64
    %v691 = vpop.permute.xlu0 %690
    %v693 = vmul.f32 %v686, %v691
    %695 = vrot.lane.b32.xlu0 %v693, 32
    %v696 = vpop.permute.xlu0 %695
    %v698 = vadd.f32 %v688, %v696
    %v699 = vtanh.pop %v698
    %701 = vrot.lane.b32.xlu0 %v699, 64
    %v702 = vpop.permute.xlu0 %701
    %v704 = vmul.f32 %v686, %v702
    %705 = vmatprep.subr.mxu0 0.0
    %706 = vmatpush1.msra.mxu0 %v50
    %707 = vmatprep.subr.mxu0 0.0
    %708 = vmatpush1.msra.mxu0 %v51
    %709 = vmatprep.subr.mxu0 0.0
    %710 = vmatpush1.msra.mxu0 %v52
    %711 = vmatprep.subr.mxu0 0.0
    %712 = vmatpush1.msra.mxu0 %v53
    %713 = vmatprep.subr.mxu0 0.0
    %714 = vmatpush1.msra.mxu0 0.0
    %715 = vmatprep.subr.mxu0 0.0
    %716 = vmatpush1.msra.mxu0 0.0
    %717 = vmatprep.subr.mxu0 0.0
    %718 = vmatpush1.msra.mxu0 0.0
    %719 = vmatprep.subr.mxu0 0.0
    %720 = vmatpush1.msra.mxu0 0.0
    %721 = vmatprep.subr.mxu0 0.0
    %722 = vmatpush1.msra.mxu0 0.0
    %723 = vmatprep.subr.mxu0 0.0
    %724 = vmatpush1.msra.mxu0 0.0
    %725 = vmatprep.subr.mxu0 0.0
    %726 = vmatpush1.msra.mxu0 0.0
    %727 = vmatprep.subr.mxu0 0.0
    %728 = vmatpush1.msra.mxu0 0.0
    %729 = vmatprep.subr.mxu0 0.0
    %730 = vmatpush1.msra.mxu0 0.0
    %731 = vmatprep.subr.mxu0 0.0
    %732 = vmatpush1.msra.mxu0 0.0
    %733 = vmatprep.subr.mxu0 0.0
    %734 = vmatpush1.msra.mxu0 0.0
    %735 = vmatprep.subr.mxu0 0.0
    %736 = vmatpush1.msra.mxu0 0.0
    %737 = vmatprep.subr.mxu0 0.0
    %738 = vmatpush1.msra.mxu0 0.0
    %739 = vmatprep.subr.mxu0 0.0
    %740 = vmatpush1.msra.mxu0 0.0
    %741 = vmatprep.subr.mxu0 0.0
    %742 = vmatpush1.msra.mxu0 0.0
    %743 = vmatprep.subr.mxu0 0.0
    %744 = vmatpush1.msra.mxu0 0.0
    %745 = vmatprep.subr.mxu0 0.0
    %746 = vmatpush1.msra.mxu0 0.0
    %747 = vmatprep.subr.mxu0 0.0
    %748 = vmatpush1.msra.mxu0 0.0
    %749 = vmatprep.subr.mxu0 0.0
    %750 = vmatpush1.msra.mxu0 0.0
    %751 = vmatprep.subr.mxu0 0.0
    %752 = vmatpush1.msra.mxu0 0.0
    %753 = vmatprep.subr.mxu0 0.0
    %754 = vmatpush1.msra.mxu0 0.0
    %755 = vmatprep.subr.mxu0 0.0
    %756 = vmatpush1.msra.mxu0 0.0
    %757 = vmatprep.subr.mxu0 0.0
    %758 = vmatpush1.msra.mxu0 0.0
    %759 = vmatprep.subr.mxu0 0.0
    %760 = vmatpush1.msra.mxu0 0.0
    %761 = vmatprep.subr.mxu0 0.0
    %762 = vmatpush1.msra.mxu0 0.0
    %763 = vmatprep.subr.mxu0 0.0
    %764 = vmatpush1.msra.mxu0 0.0
    %765 = vmatprep.subr.mxu0 0.0
    %766 = vmatpush1.msra.mxu0 0.0
    %767 = vmatprep.subr.mxu0 0.0
    %768 = vmatpush1.msra.mxu0 0.0
    %769 = vmatprep.mubr.f32.mxu0 0.0
    %770 = vmatmul.mubr.f32.gmra.mrb[0].mxu0 %v608
    %v771 = vpop.f32.mrb[0].mxu0
    %v772 = vadd.f32 0.0, %v771
    %v773 = vpop.f32.mrb[0].mxu0
    %774 = vdwg.mxu0
    %v775 = vadd.f32 %v152, %v772
    %v776 = vxor.u32 %v775, 2147483648
    %v777 = vmul.f32 %v776, 1.442695
    %v778 = vpow.pop %v777
    %v779 = vadd.f32 %v778, 1.0
    %v780 = vrcp.pop %v779
    %v781 = vmul.f32 1.0, %v780
    %v782 = vtanh.pop %v775
    %v784 = vrot.slane %v522, 4
    %v786 = vmul.f32 %v781, %v784
    %788 = vrot.lane.b32.xlu0 %v782, 64
    %v789 = vpop.permute.xlu0 %788
    %v791 = vmul.f32 %v781, %v789
    %793 = vrot.lane.b32.xlu0 %v791, 32
    %v794 = vpop.permute.xlu0 %793
    %v796 = vadd.f32 %v786, %v794
    %v797 = vtanh.pop %v796
    %799 = vrot.lane.b32.xlu0 %v797, 64
    %v800 = vpop.permute.xlu0 %799
    %v802 = vmul.f32 %v781, %v800
    %804 = vrot.lane.b32.xlu0 %v704, 32
    %v805 = vpop.permute.xlu0 %804
    %v806 = vsel %vm155, %v805, 0
    %808 = vmatprep.subr.mxu0 0.0
    %809 = vmatpush1.msra.mxu0 %v58
    %810 = vmatprep.subr.mxu0 0.0
    %811 = vmatpush1.msra.mxu0 %v59
    %812 = vmatprep.subr.mxu0 0.0
    %813 = vmatpush1.msra.mxu0 %v60
    %814 = vmatprep.subr.mxu0 0.0
    %815 = vmatpush1.msra.mxu0 %v61
    %816 = vmatprep.subr.mxu0 0.0
    %817 = vmatpush1.msra.mxu0 0.0
    %818 = vmatprep.subr.mxu0 0.0
    %819 = vmatpush1.msra.mxu0 0.0
    %820 = vmatprep.subr.mxu0 0.0
    %821 = vmatpush1.msra.mxu0 0.0
    %822 = vmatprep.subr.mxu0 0.0
    %823 = vmatpush1.msra.mxu0 0.0
    %824 = vmatprep.subr.mxu0 0.0
    %825 = vmatpush1.msra.mxu0 0.0
    %826 = vmatprep.subr.mxu0 0.0
    %827 = vmatpush1.msra.mxu0 0.0
    %828 = vmatprep.subr.mxu0 0.0
    %829 = vmatpush1.msra.mxu0 0.0
    %830 = vmatprep.subr.mxu0 0.0
    %831 = vmatpush1.msra.mxu0 0.0
    %832 = vmatprep.subr.mxu0 0.0
    %833 = vmatpush1.msra.mxu0 0.0
    %834 = vmatprep.subr.mxu0 0.0
    %835 = vmatpush1.msra.mxu0 0.0
    %836 = vmatprep.subr.mxu0 0.0
    %837 = vmatpush1.msra.mxu0 0.0
    %838 = vmatprep.subr.mxu0 0.0
    %839 = vmatpush1.msra.mxu0 0.0
    %840 = vmatprep.subr.mxu0 0.0
    %841 = vmatpush1.msra.mxu0 0.0
    %842 = vmatprep.subr.mxu0 0.0
    %843 = vmatpush1.msra.mxu0 0.0
    %844 = vmatprep.subr.mxu0 0.0
    %845 = vmatpush1.msra.mxu0 0.0
    %846 = vmatprep.subr.mxu0 0.0
    %847 = vmatpush1.msra.mxu0 0.0
    %848 = vmatprep.subr.mxu0 0.0
    %849 = vmatpush1.msra.mxu0 0.0
    %850 = vmatprep.subr.mxu0 0.0
    %851 = vmatpush1.msra.mxu0 0.0
    %852 = vmatprep.subr.mxu0 0.0
    %853 = vmatpush1.msra.mxu0 0.0
    %854 = vmatprep.subr.mxu0 0.0
    %855 = vmatpush1.msra.mxu0 0.0
    %856 = vmatprep.subr.mxu0 0.0
    %857 = vmatpush1.msra.mxu0 0.0
    %858 = vmatprep.subr.mxu0 0.0
    %859 = vmatpush1.msra.mxu0 0.0
    %860 = vmatprep.subr.mxu0 0.0
    %861 = vmatpush1.msra.mxu0 0.0
    %862 = vmatprep.subr.mxu0 0.0
    %863 = vmatpush1.msra.mxu0 0.0
    %864 = vmatprep.subr.mxu0 0.0
    %865 = vmatpush1.msra.mxu0 0.0
    %866 = vmatprep.subr.mxu0 0.0
    %867 = vmatpush1.msra.mxu0 0.0
    %868 = vmatprep.subr.mxu0 0.0
    %869 = vmatpush1.msra.mxu0 0.0
    %870 = vmatprep.subr.mxu0 0.0
    %871 = vmatpush1.msra.mxu0 0.0
    %872 = vmatprep.mubr.f32.mxu0 0.0
    %873 = vmatmul.mubr.f32.gmra.mrb[0].mxu0 %v806
    %v874 = vpop.f32.mrb[0].mxu0
    %v875 = vadd.f32 0.0, %v874
    %v876 = vpop.f32.mrb[0].mxu0
    %877 = vdwg.mxu0
    %879 = vrot.lane.b32.xlu0 %v802, 32
    %v880 = vpop.permute.xlu0 %879
    %v881 = vsel %vm155, %v880, 0
    %883 = vmatprep.subr.mxu0 0.0
    %884 = vmatpush1.msra.mxu0 %v54
    %885 = vmatprep.subr.mxu0 0.0
    %886 = vmatpush1.msra.mxu0 %v55
    %887 = vmatprep.subr.mxu0 0.0
    %888 = vmatpush1.msra.mxu0 %v56
    %889 = vmatprep.subr.mxu0 0.0
    %890 = vmatpush1.msra.mxu0 %v57
    %891 = vmatprep.subr.mxu0 0.0
    %892 = vmatpush1.msra.mxu0 0.0
    %893 = vmatprep.subr.mxu0 0.0
    %894 = vmatpush1.msra.mxu0 0.0
    %895 = vmatprep.subr.mxu0 0.0
    %896 = vmatpush1.msra.mxu0 0.0
    %897 = vmatprep.subr.mxu0 0.0
    %898 = vmatpush1.msra.mxu0 0.0
    %899 = vmatprep.subr.mxu0 0.0
    %900 = vmatpush1.msra.mxu0 0.0
    %901 = vmatprep.subr.mxu0 0.0
    %902 = vmatpush1.msra.mxu0 0.0
    %903 = vmatprep.subr.mxu0 0.0
    %904 = vmatpush1.msra.mxu0 0.0
    %905 = vmatprep.subr.mxu0 0.0
    %906 = vmatpush1.msra.mxu0 0.0
    %907 = vmatprep.subr.mxu0 0.0
    %908 = vmatpush1.msra.mxu0 0.0
    %909 = vmatprep.subr.mxu0 0.0
    %910 = vmatpush1.msra.mxu0 0.0
    %911 = vmatprep.subr.mxu0 0.0
    %912 = vmatpush1.msra.mxu0 0.0
    %913 = vmatprep.subr.mxu0 0.0
    %914 = vmatpush1.msra.mxu0 0.0
    %915 = vmatprep.subr.mxu0 0.0
    %916 = vmatpush1.msra.mxu0 0.0
    %917 = vmatprep.subr.mxu0 0.0
    %918 = vmatpush1.msra.mxu0 0.0
    %919 = vmatprep.subr.mxu0 0.0
    %920 = vmatpush1.msra.mxu0 0.0
    %921 = vmatprep.subr.mxu0 0.0
    %922 = vmatpush1.msra.mxu0 0.0
    %923 = vmatprep.subr.mxu0 0.0
    %924 = vmatpush1.msra.mxu0 0.0
    %925 = vmatprep.subr.mxu0 0.0
    %926 = vmatpush1.msra.mxu0 0.0
    %927 = vmatprep.subr.mxu0 0.0
    %928 = vmatpush1.msra.mxu0 0.0
    %929 = vmatprep.subr.mxu0 0.0
    %930 = vmatpush1.msra.mxu0 0.0
    %931 = vmatprep.subr.mxu0 0.0
    %932 = vmatpush1.msra.mxu0 0.0
    %933 = vmatprep.subr.mxu0 0.0
    %934 = vmatpush1.msra.mxu0 0.0
    %935 = vmatprep.subr.mxu0 0.0
    %936 = vmatpush1.msra.mxu0 0.0
    %937 = vmatprep.subr.mxu0 0.0
    %938 = vmatpush1.msra.mxu0 0.0
    %939 = vmatprep.subr.mxu0 0.0
    %940 = vmatpush1.msra.mxu0 0.0
    %941 = vmatprep.subr.mxu0 0.0
    %942 = vmatpush1.msra.mxu0 0.0
    %943 = vmatprep.subr.mxu0 0.0
    %944 = vmatpush1.msra.mxu0 0.0
    %945 = vmatprep.subr.mxu0 0.0
    %946 = vmatpush1.msra.mxu0 0.0
    %947 = vmatprep.mubr.f32.mxu0 0.0
    %948 = vmatmul.mubr.f32.gmra.mrb[0].mxu0 %v881
    %v949 = vpop.f32.mrb[0].mxu0
    %v950 = vadd.f32 %v875, %v949
    %v951 = vpop.f32.mrb[0].mxu0
    %952 = vdwg.mxu0
    %v953 = vadd.f32 %v950, %v402
    %v954 = vxor.u32 %v953, 2147483648
    %v955 = vmul.f32 %v954, 1.442695
    %v956 = vpow.pop %v955
    %v957 = vadd.f32 %v956, 1.0
    %v958 = vrcp.pop %v957
    %v959 = vmul.f32 1.0, %v958
    %v960 = vtanh.pop %v953
    %v961 = vmul.f32 %v959, %v698
    %963 = vrot.lane.b32.xlu0 %v960, 64
    %v964 = vpop.permute.xlu0 %963
    %v966 = vmul.f32 %v959, %v964
    %968 = vrot.lane.b32.xlu0 %v966, 32
    %v969 = vpop.permute.xlu0 %968
    %v971 = vadd.f32 %v961, %v969
    %v972 = vtanh.pop %v971
    %974 = vrot.lane.b32.xlu0 %v972, 64
    %v975 = vpop.permute.xlu0 %974
    %v977 = vmul.f32 %v959, %v975
    %978 = vmatprep.subr.mxu0 0.0
    %979 = vmatpush1.msra.mxu0 %v50
    %980 = vmatprep.subr.mxu0 0.0
    %981 = vmatpush1.msra.mxu0 %v51
    %982 = vmatprep.subr.mxu0 0.0
    %983 = vmatpush1.msra.mxu0 %v52
    %984 = vmatprep.subr.mxu0 0.0
    %985 = vmatpush1.msra.mxu0 %v53
    %986 = vmatprep.subr.mxu0 0.0
    %987 = vmatpush1.msra.mxu0 0.0
    %988 = vmatprep.subr.mxu0 0.0
    %989 = vmatpush1.msra.mxu0 0.0
    %990 = vmatprep.subr.mxu0 0.0
    %991 = vmatpush1.msra.mxu0 0.0
    %992 = vmatprep.subr.mxu0 0.0
    %993 = vmatpush1.msra.mxu0 0.0
    %994 = vmatprep.subr.mxu0 0.0
    %995 = vmatpush1.msra.mxu0 0.0
    %996 = vmatprep.subr.mxu0 0.0
    %997 = vmatpush1.msra.mxu0 0.0
    %998 = vmatprep.subr.mxu0 0.0
    %999 = vmatpush1.msra.mxu0 0.0
    %1000 = vmatprep.subr.mxu0 0.0
    %1001 = vmatpush1.msra.mxu0 0.0
    %1002 = vmatprep.subr.mxu0 0.0
    %1003 = vmatpush1.msra.mxu0 0.0
    %1004 = vmatprep.subr.mxu0 0.0
    %1005 = vmatpush1.msra.mxu0 0.0
    %1006 = vmatprep.subr.mxu0 0.0
    %1007 = vmatpush1.msra.mxu0 0.0
    %1008 = vmatprep.subr.mxu0 0.0
    %1009 = vmatpush1.msra.mxu0 0.0
    %1010 = vmatprep.subr.mxu0 0.0
    %1011 = vmatpush1.msra.mxu0 0.0
    %1012 = vmatprep.subr.mxu0 0.0
    %1013 = vmatpush1.msra.mxu0 0.0
    %1014 = vmatprep.subr.mxu0 0.0
    %1015 = vmatpush1.msra.mxu0 0.0
    %1016 = vmatprep.subr.mxu0 0.0
    %1017 = vmatpush1.msra.mxu0 0.0
    %1018 = vmatprep.subr.mxu0 0.0
    %1019 = vmatpush1.msra.mxu0 0.0
    %1020 = vmatprep.subr.mxu0 0.0
    %1021 = vmatpush1.msra.mxu0 0.0
    %1022 = vmatprep.subr.mxu0 0.0
    %1023 = vmatpush1.msra.mxu0 0.0
    %1024 = vmatprep.subr.mxu0 0.0
    %1025 = vmatpush1.msra.mxu0 0.0
    %1026 = vmatprep.subr.mxu0 0.0
    %1027 = vmatpush1.msra.mxu0 0.0
    %1028 = vmatprep.subr.mxu0 0.0
    %1029 = vmatpush1.msra.mxu0 0.0
    %1030 = vmatprep.subr.mxu0 0.0
    %1031 = vmatpush1.msra.mxu0 0.0
    %1032 = vmatprep.subr.mxu0 0.0
    %1033 = vmatpush1.msra.mxu0 0.0
    %1034 = vmatprep.subr.mxu0 0.0
    %1035 = vmatpush1.msra.mxu0 0.0
    %1036 = vmatprep.subr.mxu0 0.0
    %1037 = vmatpush1.msra.mxu0 0.0
    %1038 = vmatprep.subr.mxu0 0.0
    %1039 = vmatpush1.msra.mxu0 0.0
    %1040 = vmatprep.subr.mxu0 0.0
    %1041 = vmatpush1.msra.mxu0 0.0
    %1042 = vmatprep.mubr.f32.mxu0 0.0
    %1043 = vmatmul.mubr.f32.gmra.mrb[0].mxu0 %v881
    %v1044 = vpop.f32.mrb[0].mxu0
    %v1045 = vadd.f32 0.0, %v1044
    %v1046 = vpop.f32.mrb[0].mxu0
    %1047 = vdwg.mxu0
    %v1049 = vrot.slane %v1045, 4
    %v1051 = vadd.f32 %v152, %v1049
    %v1052 = vxor.u32 %v1051, 2147483648
    %v1053 = vmul.f32 %v1052, 1.442695
    %v1054 = vpow.pop %v1053
    %v1055 = vadd.f32 %v1054, 1.0
    %v1056 = vrcp.pop %v1055
    %v1057 = vmul.f32 1.0, %v1056
    %v1058 = vtanh.pop %v1051
    %v1060 = vrot.slane %v796, 4
    %v1062 = vmul.f32 %v1057, %v1060
    %1064 = vrot.lane.b32.xlu0 %v1058, 64
    %v1065 = vpop.permute.xlu0 %1064
    %v1067 = vmul.f32 %v1057, %v1065
    %1069 = vrot.lane.b32.xlu0 %v1067, 32
    %v1070 = vpop.permute.xlu0 %1069
    %v1072 = vadd.f32 %v1062, %v1070
    %v1073 = vtanh.pop %v1072
    %1075 = vrot.lane.b32.xlu0 %v1073, 64
    %v1076 = vpop.permute.xlu0 %1075
    %v1078 = vmul.f32 %v1057, %v1076
    %1080 = vrot.lane.b32.xlu0 %v977, 32
    %v1081 = vpop.permute.xlu0 %1080
    %v1082 = vsel %vm155, %v1081, 0
    %1084 = vmatprep.subr.mxu0 0.0
    %1085 = vmatpush1.msra.mxu0 %v58
    %1086 = vmatprep.subr.mxu0 0.0
    %1087 = vmatpush1.msra.mxu0 %v59
    %1088 = vmatprep.subr.mxu0 0.0
    %1089 = vmatpush1.msra.mxu0 %v60
    %1090 = vmatprep.subr.mxu0 0.0
    %1091 = vmatpush1.msra.mxu0 %v61
    %1092 = vmatprep.subr.mxu0 0.0
    %1093 = vmatpush1.msra.mxu0 0.0
    %1094 = vmatprep.subr.mxu0 0.0
    %1095 = vmatpush1.msra.mxu0 0.0
    %1096 = vmatprep.subr.mxu0 0.0
    %1097 = vmatpush1.msra.mxu0 0.0
    %1098 = vmatprep.subr.mxu0 0.0
    %1099 = vmatpush1.msra.mxu0 0.0
    %1100 = vmatprep.subr.mxu0 0.0
    %1101 = vmatpush1.msra.mxu0 0.0
    %1102 = vmatprep.subr.mxu0 0.0
    %1103 = vmatpush1.msra.mxu0 0.0
    %1104 = vmatprep.subr.mxu0 0.0
    %1105 = vmatpush1.msra.mxu0 0.0
    %1106 = vmatprep.subr.mxu0 0.0
    %1107 = vmatpush1.msra.mxu0 0.0
    %1108 = vmatprep.subr.mxu0 0.0
    %1109 = vmatpush1.msra.mxu0 0.0
    %1110 = vmatprep.subr.mxu0 0.0
    %1111 = vmatpush1.msra.mxu0 0.0
    %1112 = vmatprep.subr.mxu0 0.0
    %1113 = vmatpush1.msra.mxu0 0.0
    %1114 = vmatprep.subr.mxu0 0.0
    %1115 = vmatpush1.msra.mxu0 0.0
    %1116 = vmatprep.subr.mxu0 0.0
    %1117 = vmatpush1.msra.mxu0 0.0
    %1118 = vmatprep.subr.mxu0 0.0
    %1119 = vmatpush1.msra.mxu0 0.0
    %1120 = vmatprep.subr.mxu0 0.0
    %1121 = vmatpush1.msra.mxu0 0.0
    %1122 = vmatprep.subr.mxu0 0.0
    %1123 = vmatpush1.msra.mxu0 0.0
    %1124 = vmatprep.subr.mxu0 0.0
    %1125 = vmatpush1.msra.mxu0 0.0
    %1126 = vmatprep.subr.mxu0 0.0
    %1127 = vmatpush1.msra.mxu0 0.0
    %1128 = vmatprep.subr.mxu0 0.0
    %1129 = vmatpush1.msra.mxu0 0.0
    %1130 = vmatprep.subr.mxu0 0.0
    %1131 = vmatpush1.msra.mxu0 0.0
    %1132 = vmatprep.subr.mxu0 0.0
    %1133 = vmatpush1.msra.mxu0 0.0
    %1134 = vmatprep.subr.mxu0 0.0
    %1135 = vmatpush1.msra.mxu0 0.0
    %1136 = vmatprep.subr.mxu0 0.0
    %1137 = vmatpush1.msra.mxu0 0.0
    %1138 = vmatprep.subr.mxu0 0.0
    %1139 = vmatpush1.msra.mxu0 0.0
    %1140 = vmatprep.subr.mxu0 0.0
    %1141 = vmatpush1.msra.mxu0 0.0
    %1142 = vmatprep.subr.mxu0 0.0
    %1143 = vmatpush1.msra.mxu0 0.0
    %1144 = vmatprep.subr.mxu0 0.0
    %1145 = vmatpush1.msra.mxu0 0.0
    %1146 = vmatprep.subr.mxu0 0.0
    %1147 = vmatpush1.msra.mxu0 0.0
    %1148 = vmatprep.mubr.f32.mxu0 0.0
    %1149 = vmatmul.mubr.f32.gmra.mrb[0].mxu0 %v1082
    %v1150 = vpop.f32.mrb[0].mxu0
    %v1151 = vadd.f32 0.0, %v1150
    %v1152 = vpop.f32.mrb[0].mxu0
    %1153 = vdwg.mxu0
    %v1155 = vrot.slane %v1078, 4
    %1156 = vrot.lane.b32.xlu0 %v1155, 32
    %v1157 = vpop.permute.xlu0 %1156
    %v1158 = vsel %vm155, %v1157, 0
    %1160 = vmatprep.subr.mxu0 0.0
    %1161 = vmatpush1.msra.mxu0 %v54
    %1162 = vmatprep.subr.mxu0 0.0
    %1163 = vmatpush1.msra.mxu0 %v55
    %1164 = vmatprep.subr.mxu0 0.0
    %1165 = vmatpush1.msra.mxu0 %v56
    %1166 = vmatprep.subr.mxu0 0.0
    %1167 = vmatpush1.msra.mxu0 %v57
    %1168 = vmatprep.subr.mxu0 0.0
    %1169 = vmatpush1.msra.mxu0 0.0
    %1170 = vmatprep.subr.mxu0 0.0
    %1171 = vmatpush1.msra.mxu0 0.0
    %1172 = vmatprep.subr.mxu0 0.0
    %1173 = vmatpush1.msra.mxu0 0.0
    %1174 = vmatprep.subr.mxu0 0.0
    %1175 = vmatpush1.msra.mxu0 0.0
    %1176 = vmatprep.subr.mxu0 0.0
    %1177 = vmatpush1.msra.mxu0 0.0
    %1178 = vmatprep.subr.mxu0 0.0
    %1179 = vmatpush1.msra.mxu0 0.0
    %1180 = vmatprep.subr.mxu0 0.0
    %1181 = vmatpush1.msra.mxu0 0.0
    %1182 = vmatprep.subr.mxu0 0.0
    %1183 = vmatpush1.msra.mxu0 0.0
    %1184 = vmatprep.subr.mxu0 0.0
    %1185 = vmatpush1.msra.mxu0 0.0
    %1186 = vmatprep.subr.mxu0 0.0
    %1187 = vmatpush1.msra.mxu0 0.0
    %1188 = vmatprep.subr.mxu0 0.0
    %1189 = vmatpush1.msra.mxu0 0.0
    %1190 = vmatprep.subr.mxu0 0.0
    %1191 = vmatpush1.msra.mxu0 0.0
    %1192 = vmatprep.subr.mxu0 0.0
    %1193 = vmatpush1.msra.mxu0 0.0
    %1194 = vmatprep.subr.mxu0 0.0
    %1195 = vmatpush1.msra.mxu0 0.0
    %1196 = vmatprep.subr.mxu0 0.0
    %1197 = vmatpush1.msra.mxu0 0.0
    %1198 = vmatprep.subr.mxu0 0.0
    %1199 = vmatpush1.msra.mxu0 0.0
    %1200 = vmatprep.subr.mxu0 0.0
    %1201 = vmatpush1.msra.mxu0 0.0
    %1202 = vmatprep.subr.mxu0 0.0
    %1203 = vmatpush1.msra.mxu0 0.0
    %1204 = vmatprep.subr.mxu0 0.0
    %1205 = vmatpush1.msra.mxu0 0.0
    %1206 = vmatprep.subr.mxu0 0.0
    %1207 = vmatpush1.msra.mxu0 0.0
    %1208 = vmatprep.subr.mxu0 0.0
    %1209 = vmatpush1.msra.mxu0 0.0
    %1210 = vmatprep.subr.mxu0 0.0
    %1211 = vmatpush1.msra.mxu0 0.0
    %1212 = vmatprep.subr.mxu0 0.0
    %1213 = vmatpush1.msra.mxu0 0.0
    %1214 = vmatprep.subr.mxu0 0.0
    %1215 = vmatpush1.msra.mxu0 0.0
    %1216 = vmatprep.subr.mxu0 0.0
    %1217 = vmatpush1.msra.mxu0 0.0
    %1218 = vmatprep.subr.mxu0 0.0
    %1219 = vmatpush1.msra.mxu0 0.0
    %1220 = vmatprep.subr.mxu0 0.0
    %1221 = vmatpush1.msra.mxu0 0.0
    %1222 = vmatprep.subr.mxu0 0.0
    %1223 = vmatpush1.msra.mxu0 0.0
    %1224 = vmatprep.mubr.f32.mxu0 0.0
    %1225 = vmatmul.mubr.f32.gmra.mrb[0].mxu0 %v1158
    %v1226 = vpop.f32.mrb[0].mxu0
    %v1227 = vadd.f32 %v1151, %v1226
    %v1228 = vpop.f32.mrb[0].mxu0
    %1229 = vdwg.mxu0
    %v1230 = vadd.f32 %v1227, %v402
    %v1231 = vxor.u32 %v1230, 2147483648
    %v1232 = vmul.f32 %v1231, 1.442695
    %v1233 = vpow.pop %v1232
    %v1234 = vadd.f32 %v1233, 1.0
    %v1235 = vrcp.pop %v1234
    %v1236 = vmul.f32 1.0, %v1235
    %v1237 = vtanh.pop %v1230
    %v1238 = vmul.f32 %v1236, %v971
    %1240 = vrot.lane.b32.xlu0 %v1237, 64
    %v1241 = vpop.permute.xlu0 %1240
    %v1243 = vmul.f32 %v1236, %v1241
    %1245 = vrot.lane.b32.xlu0 %v1243, 32
    %v1246 = vpop.permute.xlu0 %1245
    %v1248 = vadd.f32 %v1238, %v1246
    %v1249 = vtanh.pop %v1248
    %1251 = vrot.lane.b32.xlu0 %v1249, 64
    %v1252 = vpop.permute.xlu0 %1251
    %v1254 = vmul.f32 %v1236, %v1252
    %v1255 = vld [vmem:[#allocation5] sm:$0xff]
    %v1256 = vld [vmem:[#allocation5 + $0x8] sm:$0xff]
    %v1257 = vld [vmem:[#allocation5 + $0x10] sm:$0xff]
    %v1258 = vld [vmem:[#allocation5 + $0x18] sm:$0xff]
    %v1259 = vld [vmem:[#allocation5 + $0x20] sm:$0xff]
    %v1260 = vld [vmem:[#allocation5 + $0x28] sm:$0xff]
    %v1261 = vld [vmem:[#allocation5 + $0x30] sm:$0xff]
    %v1262 = vld [vmem:[#allocation5 + $0x38] sm:$0xff]
    %v1263 = vld [vmem:[#allocation5 + $0x40] sm:$0xff]
    %v1264 = vld [vmem:[#allocation5 + $0x48] sm:$0xff]
    %v1265 = vld [vmem:[#allocation5 + $0x50] sm:$0xff]
    %v1266 = vld [vmem:[#allocation5 + $0x58] sm:$0xff]
    %v1267 = vld [vmem:[#allocation5 + $0x60] sm:$0xff]
    %v1268 = vld [vmem:[#allocation5 + $0x68] sm:$0xff]
    %v1269 = vld [vmem:[#allocation5 + $0x70] sm:$0xff]
    %v1270 = vld [vmem:[#allocation5 + $0x78] sm:$0xff]
    %v1271 = vld [vmem:[%s4] sm:$0xf]
    %v1272 = vlaneseq
    %v1273 = vshrl.u32 %v1272, 7
    %v1274 = vsub.s32 0, %v1273
    %v1275 = vrot.slane %v1271, %v1274
    %v1277 = vrot.slane %v1254, 2
    %1278 = vrot.lane.b32.xlu0 %v1277, 32
    %v1279 = vpop.permute.xlu0 %1278
    %v1280 = vsel %vm155, %v1279, 0
    %1282 = vmatprep.subr.mxu0 0.0
    %1283 = vmatpush1.msra.mxu0 %v1255
    %1284 = vmatprep.subr.mxu0 0.0
    %1285 = vmatpush1.msra.mxu0 %v1256
    %1286 = vmatprep.subr.mxu0 0.0
    %1287 = vmatpush1.msra.mxu0 %v1257
    %1288 = vmatprep.subr.mxu0 0.0
    %1289 = vmatpush1.msra.mxu0 %v1258
    %1290 = vmatprep.subr.mxu0 0.0
    %1291 = vmatpush1.msra.mxu0 0.0
    %1292 = vmatprep.subr.mxu0 0.0
    %1293 = vmatpush1.msra.mxu0 0.0
    %1294 = vmatprep.subr.mxu0 0.0
    %1295 = vmatpush1.msra.mxu0 0.0
    %1296 = vmatprep.subr.mxu0 0.0
    %1297 = vmatpush1.msra.mxu0 0.0
    %1298 = vmatprep.subr.mxu0 0.0
    %1299 = vmatpush1.msra.mxu0 0.0
    %1300 = vmatprep.subr.mxu0 0.0
    %1301 = vmatpush1.msra.mxu0 0.0
    %1302 = vmatprep.subr.mxu0 0.0
    %1303 = vmatpush1.msra.mxu0 0.0
    %1304 = vmatprep.subr.mxu0 0.0
    %1305 = vmatpush1.msra.mxu0 0.0
    %1306 = vmatprep.subr.mxu0 0.0
    %1307 = vmatpush1.msra.mxu0 0.0
    %1308 = vmatprep.subr.mxu0 0.0
    %1309 = vmatpush1.msra.mxu0 0.0
    %1310 = vmatprep.subr.mxu0 0.0
    %1311 = vmatpush1.msra.mxu0 0.0
    %1312 = vmatprep.subr.mxu0 0.0
    %1313 = vmatpush1.msra.mxu0 0.0
    %1314 = vmatprep.subr.mxu0 0.0
    %1315 = vmatpush1.msra.mxu0 0.0
    %1316 = vmatprep.subr.mxu0 0.0
    %1317 = vmatpush1.msra.mxu0 0.0
    %1318 = vmatprep.subr.mxu0 0.0
    %1319 = vmatpush1.msra.mxu0 0.0
    %1320 = vmatprep.subr.mxu0 0.0
    %1321 = vmatpush1.msra.mxu0 0.0
    %1322 = vmatprep.subr.mxu0 0.0
    %1323 = vmatpush1.msra.mxu0 0.0
    %1324 = vmatprep.subr.mxu0 0.0
    %1325 = vmatpush1.msra.mxu0 0.0
    %1326 = vmatprep.subr.mxu0 0.0
    %1327 = vmatpush1.msra.mxu0 0.0
    %1328 = vmatprep.subr.mxu0 0.0
    %1329 = vmatpush1.msra.mxu0 0.0
    %1330 = vmatprep.subr.mxu0 0.0
    %1331 = vmatpush1.msra.mxu0 0.0
    %1332 = vmatprep.subr.mxu0 0.0
    %1333 = vmatpush1.msra.mxu0 0.0
    %1334 = vmatprep.subr.mxu0 0.0
    %1335 = vmatpush1.msra.mxu0 0.0
    %1336 = vmatprep.subr.mxu0 0.0
    %1337 = vmatpush1.msra.mxu0 0.0
    %1338 = vmatprep.subr.mxu0 0.0
    %1339 = vmatpush1.msra.mxu0 0.0
    %1340 = vmatprep.subr.mxu0 0.0
    %1341 = vmatpush1.msra.mxu0 0.0
    %1342 = vmatprep.subr.mxu0 0.0
    %1343 = vmatpush1.msra.mxu0 0.0
    %1344 = vmatprep.subr.mxu0 0.0
    %1345 = vmatpush1.msra.mxu0 0.0
    %1346 = vmatprep.mubr.f32.mxu0 0.0
    %1347 = vmatmul.mubr.f32.gmra.mrb[0].mxu0 %v1280
    %v1348 = vpop.f32.mrb[0].mxu0
    %v1349 = vadd.f32 %v1275, %v1348
    %v1350 = vpop.f32.mrb[0].mxu0
    %1351 = vdwg.mxu0
    %v1352 = vlaneseq
    %v1353 = vshrl.u32 %v1352, 7
    %v1354 = vsub.s32 1, %v1353
    %v1355 = vrot.slane %v1271, %v1354
    %1356 = vrot.lane.b32.xlu0 %v1254, 32
    %v1357 = vpop.permute.xlu0 %1356
    %v1358 = vsel %vm155, %v1357, 0
    %1360 = vmatprep.subr.mxu0 0.0
    %1361 = vmatpush1.msra.mxu0 %v1259
    %1362 = vmatprep.subr.mxu0 0.0
    %1363 = vmatpush1.msra.mxu0 %v1260
    %1364 = vmatprep.subr.mxu0 0.0
    %1365 = vmatpush1.msra.mxu0 %v1261
    %1366 = vmatprep.subr.mxu0 0.0
    %1367 = vmatpush1.msra.mxu0 %v1262
    %1368 = vmatprep.subr.mxu0 0.0
    %1369 = vmatpush1.msra.mxu0 0.0
    %1370 = vmatprep.subr.mxu0 0.0
    %1371 = vmatpush1.msra.mxu0 0.0
    %1372 = vmatprep.subr.mxu0 0.0
    %1373 = vmatpush1.msra.mxu0 0.0
    %1374 = vmatprep.subr.mxu0 0.0
    %1375 = vmatpush1.msra.mxu0 0.0
    %1376 = vmatprep.subr.mxu0 0.0
    %1377 = vmatpush1.msra.mxu0 0.0
    %1378 = vmatprep.subr.mxu0 0.0
    %1379 = vmatpush1.msra.mxu0 0.0
    %1380 = vmatprep.subr.mxu0 0.0
    %1381 = vmatpush1.msra.mxu0 0.0
    %1382 = vmatprep.subr.mxu0 0.0
    %1383 = vmatpush1.msra.mxu0 0.0
    %1384 = vmatprep.subr.mxu0 0.0
    %1385 = vmatpush1.msra.mxu0 0.0
    %1386 = vmatprep.subr.mxu0 0.0
    %1387 = vmatpush1.msra.mxu0 0.0
    %1388 = vmatprep.subr.mxu0 0.0
    %1389 = vmatpush1.msra.mxu0 0.0
    %1390 = vmatprep.subr.mxu0 0.0
    %1391 = vmatpush1.msra.mxu0 0.0
    %1392 = vmatprep.subr.mxu0 0.0
    %1393 = vmatpush1.msra.mxu0 0.0
    %1394 = vmatprep.subr.mxu0 0.0
    %1395 = vmatpush1.msra.mxu0 0.0
    %1396 = vmatprep.subr.mxu0 0.0
    %1397 = vmatpush1.msra.mxu0 0.0
    %1398 = vmatprep.subr.mxu0 0.0
    %1399 = vmatpush1.msra.mxu0 0.0
    %1400 = vmatprep.subr.mxu0 0.0
    %1401 = vmatpush1.msra.mxu0 0.0
    %1402 = vmatprep.subr.mxu0 0.0
    %1403 = vmatpush1.msra.mxu0 0.0
    %1404 = vmatprep.subr.mxu0 0.0
    %1405 = vmatpush1.msra.mxu0 0.0
    %1406 = vmatprep.subr.mxu0 0.0
    %1407 = vmatpush1.msra.mxu0 0.0
    %1408 = vmatprep.subr.mxu0 0.0
    %1409 = vmatpush1.msra.mxu0 0.0
    %1410 = vmatprep.subr.mxu0 0.0
    %1411 = vmatpush1.msra.mxu0 0.0
    %1412 = vmatprep.subr.mxu0 0.0
    %1413 = vmatpush1.msra.mxu0 0.0
    %1414 = vmatprep.subr.mxu0 0.0
    %1415 = vmatpush1.msra.mxu0 0.0
    %1416 = vmatprep.subr.mxu0 0.0
    %1417 = vmatpush1.msra.mxu0 0.0
    %1418 = vmatprep.subr.mxu0 0.0
    %1419 = vmatpush1.msra.mxu0 0.0
    %1420 = vmatprep.subr.mxu0 0.0
    %1421 = vmatpush1.msra.mxu0 0.0
    %1422 = vmatprep.subr.mxu0 0.0
    %1423 = vmatpush1.msra.mxu0 0.0
    %1424 = vmatprep.mubr.f32.mxu0 0.0
    %1425 = vmatmul.mubr.f32.gmra.mrb[0].mxu0 %v1358
    %v1426 = vpop.f32.mrb[0].mxu0
    %v1427 = vadd.f32 %v1355, %v1426
    %v1428 = vpop.f32.mrb[0].mxu0
    %1429 = vdwg.mxu0
    %v1430 = vlaneseq
    %v1431 = vshrl.u32 %v1430, 7
    %v1432 = vsub.s32 2, %v1431
    %v1433 = vrot.slane %v1271, %v1432
    %1434 = vmatprep.subr.mxu0 0.0
    %1435 = vmatpush1.msra.mxu0 %v1263
    %1436 = vmatprep.subr.mxu0 0.0
    %1437 = vmatpush1.msra.mxu0 %v1264
    %1438 = vmatprep.subr.mxu0 0.0
    %1439 = vmatpush1.msra.mxu0 %v1265
    %1440 = vmatprep.subr.mxu0 0.0
    %1441 = vmatpush1.msra.mxu0 %v1266
    %1442 = vmatprep.subr.mxu0 0.0
    %1443 = vmatpush1.msra.mxu0 0.0
    %1444 = vmatprep.subr.mxu0 0.0
    %1445 = vmatpush1.msra.mxu0 0.0
    %1446 = vmatprep.subr.mxu0 0.0
    %1447 = vmatpush1.msra.mxu0 0.0
    %1448 = vmatprep.subr.mxu0 0.0
    %1449 = vmatpush1.msra.mxu0 0.0
    %1450 = vmatprep.subr.mxu0 0.0
    %1451 = vmatpush1.msra.mxu0 0.0
    %1452 = vmatprep.subr.mxu0 0.0
    %1453 = vmatpush1.msra.mxu0 0.0
    %1454 = vmatprep.subr.mxu0 0.0
    %1455 = vmatpush1.msra.mxu0 0.0
    %1456 = vmatprep.subr.mxu0 0.0
    %1457 = vmatpush1.msra.mxu0 0.0
    %1458 = vmatprep.subr.mxu0 0.0
    %1459 = vmatpush1.msra.mxu0 0.0
    %1460 = vmatprep.subr.mxu0 0.0
    %1461 = vmatpush1.msra.mxu0 0.0
    %1462 = vmatprep.subr.mxu0 0.0
    %1463 = vmatpush1.msra.mxu0 0.0
    %1464 = vmatprep.subr.mxu0 0.0
    %1465 = vmatpush1.msra.mxu0 0.0
    %1466 = vmatprep.subr.mxu0 0.0
    %1467 = vmatpush1.msra.mxu0 0.0
    %1468 = vmatprep.subr.mxu0 0.0
    %1469 = vmatpush1.msra.mxu0 0.0
    %1470 = vmatprep.subr.mxu0 0.0
    %1471 = vmatpush1.msra.mxu0 0.0
    %1472 = vmatprep.subr.mxu0 0.0
    %1473 = vmatpush1.msra.mxu0 0.0
    %1474 = vmatprep.subr.mxu0 0.0
    %1475 = vmatpush1.msra.mxu0 0.0
    %1476 = vmatprep.subr.mxu0 0.0
    %1477 = vmatpush1.msra.mxu0 0.0
    %1478 = vmatprep.subr.mxu0 0.0
    %1479 = vmatpush1.msra.mxu0 0.0
    %1480 = vmatprep.subr.mxu0 0.0
    %1481 = vmatpush1.msra.mxu0 0.0
    %1482 = vmatprep.subr.mxu0 0.0
    %1483 = vmatpush1.msra.mxu0 0.0
    %1484 = vmatprep.subr.mxu0 0.0
    %1485 = vmatpush1.msra.mxu0 0.0
    %1486 = vmatprep.subr.mxu0 0.0
    %1487 = vmatpush1.msra.mxu0 0.0
    %1488 = vmatprep.subr.mxu0 0.0
    %1489 = vmatpush1.msra.mxu0 0.0
    %1490 = vmatprep.subr.mxu0 0.0
    %1491 = vmatpush1.msra.mxu0 0.0
    %1492 = vmatprep.subr.mxu0 0.0
    %1493 = vmatpush1.msra.mxu0 0.0
    %1494 = vmatprep.subr.mxu0 0.0
    %1495 = vmatpush1.msra.mxu0 0.0
    %1496 = vmatprep.subr.mxu0 0.0
    %1497 = vmatpush1.msra.mxu0 0.0
    %1498 = vmatprep.mubr.f32.mxu0 0.0
    %1499 = vmatmul.mubr.f32.gmra.mrb[0].mxu0 %v1358
    %v1500 = vpop.f32.mrb[0].mxu0
    %v1501 = vadd.f32 %v1433, %v1500
    %v1502 = vpop.f32.mrb[0].mxu0
    %1503 = vdwg.mxu0
    %vm1504 = vcmask 64512
    %v1506 = vsel %vm1504, %v1349, 0
    %v1509 = vsel %vm1504, %v1427, 0
    %1511 = vmatprep.subr.mxu0 0.0
    %1512 = vmatpush1.xpose.msra.mxu0 %v1509
    %1513 = vmatprep.subr.mxu0 0.0
    %1514 = vmatpush1.xpose.msra.mxu0 0.0
    %1515 = vmatprep.subr.mxu0 0.0
    %1516 = vmatpush1.xpose.msra.mxu0 0.0
    %1517 = vmatprep.subr.mxu0 0.0
    %1518 = vmatpush1.xpose.msra.mxu0 0.0
    %1519 = vmatprep.subr.mxu0 0.0
    %1520 = vmatpush1.xpose.msra.mxu0 0.0
    %1521 = vmatprep.subr.mxu0 0.0
    %1522 = vmatpush1.xpose.msra.mxu0 0.0
    %1523 = vmatprep.subr.mxu0 0.0
    %1524 = vmatpush1.xpose.msra.mxu0 0.0
    %1525 = vmatprep.subr.mxu0 0.0
    %1526 = vmatpush1.xpose.msra.mxu0 0.0
    %1527 = vmatprep.subr.mxu0 0.0
    %1528 = vmatpush1.xpose.msra.mxu0 0.0
    %1529 = vmatprep.subr.mxu0 0.0
    %1530 = vmatpush1.xpose.msra.mxu0 0.0
    %1531 = vmatprep.subr.mxu0 0.0
    %1532 = vmatpush1.xpose.msra.mxu0 0.0
    %1533 = vmatprep.subr.mxu0 0.0
    %1534 = vmatpush1.xpose.msra.mxu0 0.0
    %1535 = vmatprep.subr.mxu0 0.0
    %1536 = vmatpush1.xpose.msra.mxu0 0.0
    %1537 = vmatprep.subr.mxu0 0.0
    %1538 = vmatpush1.xpose.msra.mxu0 0.0
    %1539 = vmatprep.subr.mxu0 0.0
    %1540 = vmatpush1.xpose.msra.mxu0 0.0
    %1541 = vmatprep.subr.mxu0 0.0
    %1542 = vmatpush1.xpose.msra.mxu0 0.0
    %1543 = vmatprep.subr.mxu0 0.0
    %1544 = vmatpush1.xpose.msra.mxu0 0.0
    %1545 = vmatprep.subr.mxu0 0.0
    %1546 = vmatpush1.xpose.msra.mxu0 0.0
    %1547 = vmatprep.subr.mxu0 0.0
    %1548 = vmatpush1.xpose.msra.mxu0 0.0
    %1549 = vmatprep.subr.mxu0 0.0
    %1550 = vmatpush1.xpose.msra.mxu0 0.0
    %1551 = vmatprep.subr.mxu0 0.0
    %1552 = vmatpush1.xpose.msra.mxu0 0.0
    %1553 = vmatprep.subr.mxu0 0.0
    %1554 = vmatpush1.xpose.msra.mxu0 0.0
    %1555 = vmatprep.subr.mxu0 0.0
    %1556 = vmatpush1.xpose.msra.mxu0 0.0
    %1557 = vmatprep.subr.mxu0 0.0
    %1558 = vmatpush1.xpose.msra.mxu0 0.0
    %1559 = vmatprep.subr.mxu0 0.0
    %1560 = vmatpush1.xpose.msra.mxu0 0.0
    %1561 = vmatprep.subr.mxu0 0.0
    %1562 = vmatpush1.xpose.msra.mxu0 0.0
    %1563 = vmatprep.subr.mxu0 0.0
    %1564 = vmatpush1.xpose.msra.mxu0 0.0
    %1565 = vmatprep.subr.mxu0 0.0
    %1566 = vmatpush1.xpose.msra.mxu0 0.0
    %1567 = vmatprep.subr.mxu0 0.0
    %1568 = vmatpush1.xpose.msra.mxu0 0.0
    %1569 = vmatprep.subr.mxu0 0.0
    %1570 = vmatpush1.xpose.msra.mxu0 0.0
    %1571 = vmatprep.subr.mxu0 0.0
    %1572 = vmatpush1.xpose.msra.mxu0 0.0
    %1573 = vmatprep.subr.mxu0 0.0
    %1574 = vmatpush1.xpose.msra.mxu0 0.0
    %1575 = vmatprep.mubr.f32.mxu0 0.0
    %1576 = vmatmul.mubr.f32.gmra.mrb[0].mxu0 %v1506
    %v1577 = vpop.f32.mrb[0].mxu0
    %v1578 = vadd.f32 0.0, %v1577
    %v1579 = vpop.f32.mrb[0].mxu0
    %1580 = vdwg.mxu0
    %vm1581 = vcmask 9216
    %v1582 = vsel %vm1581, %v1578, -inf
    %1583 = vmax.xlane.f32.xlu0 %v1582
    %v1584 = vpop.xlane.xlu0 %1583
    %v1585 = vsub.f32 %v1578, %v1584
    %v1586 = vmul.f32 %v1585, 1.442695
    %v1587 = vpow.pop %v1586
    %v1588 = vsel %vm1581, %v1587, 0.0
    %1589 = vadd.xlane.f32.xlu0 %v1588
    %v1590 = vpop.xlane.xlu0 %1589
    %v1591 = vrcp.pop %v1590
    %v1592 = vmul.f32 %v1587, %v1591
    %vm1593 = vcmask 15360
    %v1595 = vsel %vm1593, %v1592, 0
    %vm1597 = vcmask 1041408
    %v1599 = vsel %vm1597, %v1501, 0
    %1601 = vmatprep.subr.mxu0 0.0
    %1602 = vmatpush1.msra.mxu0 %v1599
    %1603 = vmatprep.subr.mxu0 0.0
    %1604 = vmatpush1.msra.mxu0 0.0
    %1605 = vmatprep.subr.mxu0 0.0
    %1606 = vmatpush1.msra.mxu0 0.0
    %1607 = vmatprep.subr.mxu0 0.0
    %1608 = vmatpush1.msra.mxu0 0.0
    %1609 = vmatprep.subr.mxu0 0.0
    %1610 = vmatpush1.msra.mxu0 0.0
    %1611 = vmatprep.subr.mxu0 0.0
    %1612 = vmatpush1.msra.mxu0 0.0
    %1613 = vmatprep.subr.mxu0 0.0
    %1614 = vmatpush1.msra.mxu0 0.0
    %1615 = vmatprep.subr.mxu0 0.0
    %1616 = vmatpush1.msra.mxu0 0.0
    %1617 = vmatprep.subr.mxu0 0.0
    %1618 = vmatpush1.msra.mxu0 0.0
    %1619 = vmatprep.subr.mxu0 0.0
    %1620 = vmatpush1.msra.mxu0 0.0
    %1621 = vmatprep.subr.mxu0 0.0
    %1622 = vmatpush1.msra.mxu0 0.0
    %1623 = vmatprep.subr.mxu0 0.0
    %1624 = vmatpush1.msra.mxu0 0.0
    %1625 = vmatprep.subr.mxu0 0.0
    %1626 = vmatpush1.msra.mxu0 0.0
    %1627 = vmatprep.subr.mxu0 0.0
    %1628 = vmatpush1.msra.mxu0 0.0
    %1629 = vmatprep.subr.mxu0 0.0
    %1630 = vmatpush1.msra.mxu0 0.0
    %1631 = vmatprep.subr.mxu0 0.0
    %1632 = vmatpush1.msra.mxu0 0.0
    %1633 = vmatprep.subr.mxu0 0.0
    %1634 = vmatpush1.msra.mxu0 0.0
    %1635 = vmatprep.subr.mxu0 0.0
    %1636 = vmatpush1.msra.mxu0 0.0
    %1637 = vmatprep.subr.mxu0 0.0
    %1638 = vmatpush1.msra.mxu0 0.0
    %1639 = vmatprep.subr.mxu0 0.0
    %1640 = vmatpush1.msra.mxu0 0.0
    %1641 = vmatprep.subr.mxu0 0.0
    %1642 = vmatpush1.msra.mxu0 0.0
    %1643 = vmatprep.subr.mxu0 0.0
    %1644 = vmatpush1.msra.mxu0 0.0
    %1645 = vmatprep.subr.mxu0 0.0
    %1646 = vmatpush1.msra.mxu0 0.0
    %1647 = vmatprep.subr.mxu0 0.0
    %1648 = vmatpush1.msra.mxu0 0.0
    %1649 = vmatprep.subr.mxu0 0.0
    %1650 = vmatpush1.msra.mxu0 0.0
    %1651 = vmatprep.subr.mxu0 0.0
    %1652 = vmatpush1.msra.mxu0 0.0
    %1653 = vmatprep.subr.mxu0 0.0
    %1654 = vmatpush1.msra.mxu0 0.0
    %1655 = vmatprep.subr.mxu0 0.0
    %1656 = vmatpush1.msra.mxu0 0.0
    %1657 = vmatprep.subr.mxu0 0.0
    %1658 = vmatpush1.msra.mxu0 0.0
    %1659 = vmatprep.subr.mxu0 0.0
    %1660 = vmatpush1.msra.mxu0 0.0
    %1661 = vmatprep.subr.mxu0 0.0
    %1662 = vmatpush1.msra.mxu0 0.0
    %1663 = vmatprep.subr.mxu0 0.0
    %1664 = vmatpush1.msra.mxu0 0.0
    %1665 = vmatprep.mubr.f32.mxu0 0.0
    %1666 = vmatmul.mubr.f32.gmra.mrb[0].mxu0 %v1595
    %v1667 = vpop.f32.mrb[0].mxu0
    %v1668 = vadd.f32 0.0, %v1667
    %v1669 = vpop.f32.mrb[0].mxu0
    %1670 = vdwg.mxu0
    %1671 = vrot.lane.b32.xlu0 %v1349, 120
    %v1672 = vpop.permute.xlu0 %1671
    %1673 = vrot.lane.b32.xlu0 %v1427, 120
    %v1674 = vpop.permute.xlu0 %1673
    %v1675 = vsel %vm1504, %v1672, 0
    %v1677 = vsel %vm1504, %v1674, 0
    %1679 = vmatprep.subr.mxu0 0.0
    %1680 = vmatpush1.xpose.msra.mxu0 %v1677
    %1681 = vmatprep.subr.mxu0 0.0
    %1682 = vmatpush1.xpose.msra.mxu0 0.0
    %1683 = vmatprep.subr.mxu0 0.0
    %1684 = vmatpush1.xpose.msra.mxu0 0.0
    %1685 = vmatprep.subr.mxu0 0.0
    %1686 = vmatpush1.xpose.msra.mxu0 0.0
    %1687 = vmatprep.subr.mxu0 0.0
    %1688 = vmatpush1.xpose.msra.mxu0 0.0
    %1689 = vmatprep.subr.mxu0 0.0
    %1690 = vmatpush1.xpose.msra.mxu0 0.0
    %1691 = vmatprep.subr.mxu0 0.0
    %1692 = vmatpush1.xpose.msra.mxu0 0.0
    %1693 = vmatprep.subr.mxu0 0.0
    %1694 = vmatpush1.xpose.msra.mxu0 0.0
    %1695 = vmatprep.subr.mxu0 0.0
    %1696 = vmatpush1.xpose.msra.mxu0 0.0
    %1697 = vmatprep.subr.mxu0 0.0
    %1698 = vmatpush1.xpose.msra.mxu0 0.0
    %1699 = vmatprep.subr.mxu0 0.0
    %1700 = vmatpush1.xpose.msra.mxu0 0.0
    %1701 = vmatprep.subr.mxu0 0.0
    %1702 = vmatpush1.xpose.msra.mxu0 0.0
    %1703 = vmatprep.subr.mxu0 0.0
    %1704 = vmatpush1.xpose.msra.mxu0 0.0
    %1705 = vmatprep.subr.mxu0 0.0
    %1706 = vmatpush1.xpose.msra.mxu0 0.0
    %1707 = vmatprep.subr.mxu0 0.0
    %1708 = vmatpush1.xpose.msra.mxu0 0.0
    %1709 = vmatprep.subr.mxu0 0.0
    %1710 = vmatpush1.xpose.msra.mxu0 0.0
    %1711 = vmatprep.subr.mxu0 0.0
    %1712 = vmatpush1.xpose.msra.mxu0 0.0
    %1713 = vmatprep.subr.mxu0 0.0
    %1714 = vmatpush1.xpose.msra.mxu0 0.0
    %1715 = vmatprep.subr.mxu0 0.0
    %1716 = vmatpush1.xpose.msra.mxu0 0.0
    %1717 = vmatprep.subr.mxu0 0.0
    %1718 = vmatpush1.xpose.msra.mxu0 0.0
    %1719 = vmatprep.subr.mxu0 0.0
    %1720 = vmatpush1.xpose.msra.mxu0 0.0
    %1721 = vmatprep.subr.mxu0 0.0
    %1722 = vmatpush1.xpose.msra.mxu0 0.0
    %1723 = vmatprep.subr.mxu0 0.0
    %1724 = vmatpush1.xpose.msra.mxu0 0.0
    %1725 = vmatprep.subr.mxu0 0.0
    %1726 = vmatpush1.xpose.msra.mxu0 0.0
    %1727 = vmatprep.subr.mxu0 0.0
    %1728 = vmatpush1.xpose.msra.mxu0 0.0
    %1729 = vmatprep.subr.mxu0 0.0
    %1730 = vmatpush1.xpose.msra.mxu0 0.0
    %1731 = vmatprep.subr.mxu0 0.0
    %1732 = vmatpush1.xpose.msra.mxu0 0.0
    %1733 = vmatprep.subr.mxu0 0.0
    %1734 = vmatpush1.xpose.msra.mxu0 0.0
    %1735 = vmatprep.subr.mxu0 0.0
    %1736 = vmatpush1.xpose.msra.mxu0 0.0
    %1737 = vmatprep.subr.mxu0 0.0
    %1738 = vmatpush1.xpose.msra.mxu0 0.0
    %1739 = vmatprep.subr.mxu0 0.0
    %1740 = vmatpush1.xpose.msra.mxu0 0.0
    %1741 = vmatprep.subr.mxu0 0.0
    %1742 = vmatpush1.xpose.msra.mxu0 0.0
    %1743 = vmatprep.mubr.f32.mxu0 0.0
    %1744 = vmatmul.mubr.f32.gmra.mrb[0].mxu0 %v1675
    %v1745 = vpop.f32.mrb[0].mxu0
    %v1746 = vadd.f32 0.0, %v1745
    %v1747 = vpop.f32.mrb[0].mxu0
    %1748 = vdwg.mxu0
    %v1749 = vsel %vm1581, %v1746, -inf
    %1750 = vmax.xlane.f32.xlu0 %v1749
    %v1751 = vpop.xlane.xlu0 %1750
    %v1752 = vsub.f32 %v1746, %v1751
    %v1753 = vmul.f32 %v1752, 1.442695
    %v1754 = vpow.pop %v1753
    %v1755 = vsel %vm1581, %v1754, 0.0
    %1756 = vadd.xlane.f32.xlu0 %v1755
    %v1757 = vpop.xlane.xlu0 %1756
    %v1758 = vrcp.pop %v1757
    %v1759 = vmul.f32 %v1754, %v1758
    %1760 = vrot.lane.b32.xlu0 %v1501, 120
    %v1761 = vpop.permute.xlu0 %1760
    %v1763 = vsel %vm1593, %v1759, 0
    %v1765 = vsel %vm1597, %v1761, 0
    %1767 = vmatprep.subr.mxu0 0.0
    %1768 = vmatpush1.msra.mxu0 %v1765
    %1769 = vmatprep.subr.mxu0 0.0
    %1770 = vmatpush1.msra.mxu0 0.0
    %1771 = vmatprep.subr.mxu0 0.0
    %1772 = vmatpush1.msra.mxu0 0.0
    %1773 = vmatprep.subr.mxu0 0.0
    %1774 = vmatpush1.msra.mxu0 0.0
    %1775 = vmatprep.subr.mxu0 0.0
    %1776 = vmatpush1.msra.mxu0 0.0
    %1777 = vmatprep.subr.mxu0 0.0
    %1778 = vmatpush1.msra.mxu0 0.0
    %1779 = vmatprep.subr.mxu0 0.0
    %1780 = vmatpush1.msra.mxu0 0.0
    %1781 = vmatprep.subr.mxu0 0.0
    %1782 = vmatpush1.msra.mxu0 0.0
    %1783 = vmatprep.subr.mxu0 0.0
    %1784 = vmatpush1.msra.mxu0 0.0
    %1785 = vmatprep.subr.mxu0 0.0
    %1786 = vmatpush1.msra.mxu0 0.0
    %1787 = vmatprep.subr.mxu0 0.0
    %1788 = vmatpush1.msra.mxu0 0.0
    %1789 = vmatprep.subr.mxu0 0.0
    %1790 = vmatpush1.msra.mxu0 0.0
    %1791 = vmatprep.subr.mxu0 0.0
    %1792 = vmatpush1.msra.mxu0 0.0
    %1793 = vmatprep.subr.mxu0 0.0
    %1794 = vmatpush1.msra.mxu0 0.0
    %1795 = vmatprep.subr.mxu0 0.0
    %1796 = vmatpush1.msra.mxu0 0.0
    %1797 = vmatprep.subr.mxu0 0.0
    %1798 = vmatpush1.msra.mxu0 0.0
    %1799 = vmatprep.subr.mxu0 0.0
    %1800 = vmatpush1.msra.mxu0 0.0
    %1801 = vmatprep.subr.mxu0 0.0
    %1802 = vmatpush1.msra.mxu0 0.0
    %1803 = vmatprep.subr.mxu0 0.0
    %1804 = vmatpush1.msra.mxu0 0.0
    %1805 = vmatprep.subr.mxu0 0.0
    %1806 = vmatpush1.msra.mxu0 0.0
    %1807 = vmatprep.subr.mxu0 0.0
    %1808 = vmatpush1.msra.mxu0 0.0
    %1809 = vmatprep.subr.mxu0 0.0
    %1810 = vmatpush1.msra.mxu0 0.0
    %1811 = vmatprep.subr.mxu0 0.0
    %1812 = vmatpush1.msra.mxu0 0.0
    %1813 = vmatprep.subr.mxu0 0.0
    %1814 = vmatpush1.msra.mxu0 0.0
    %1815 = vmatprep.subr.mxu0 0.0
    %1816 = vmatpush1.msra.mxu0 0.0
    %1817 = vmatprep.subr.mxu0 0.0
    %1818 = vmatpush1.msra.mxu0 0.0
    %1819 = vmatprep.subr.mxu0 0.0
    %1820 = vmatpush1.msra.mxu0 0.0
    %1821 = vmatprep.subr.mxu0 0.0
    %1822 = vmatpush1.msra.mxu0 0.0
    %1823 = vmatprep.subr.mxu0 0.0
    %1824 = vmatpush1.msra.mxu0 0.0
    %1825 = vmatprep.subr.mxu0 0.0
    %1826 = vmatpush1.msra.mxu0 0.0
    %1827 = vmatprep.subr.mxu0 0.0
    %1828 = vmatpush1.msra.mxu0 0.0
    %1829 = vmatprep.subr.mxu0 0.0
    %1830 = vmatpush1.msra.mxu0 0.0
    %1831 = vmatprep.mubr.f32.mxu0 0.0
    %1832 = vmatmul.mubr.f32.gmra.mrb[0].mxu0 %v1763
    %v1833 = vpop.f32.mrb[0].mxu0
    %v1834 = vadd.f32 0.0, %v1833
    %v1835 = vpop.f32.mrb[0].mxu0
    %1836 = vdwg.mxu0
    %1837 = vrot.lane.b32.xlu0 %v1349, 112
    %v1838 = vpop.permute.xlu0 %1837
    %1839 = vrot.lane.b32.xlu0 %v1427, 112
    %v1840 = vpop.permute.xlu0 %1839
    %v1841 = vsel %vm1504, %v1838, 0
    %v1843 = vsel %vm1504, %v1840, 0
    %1845 = vmatprep.subr.mxu0 0.0
    %1846 = vmatpush1.xpose.msra.mxu0 %v1843
    %1847 = vmatprep.subr.mxu0 0.0
    %1848 = vmatpush1.xpose.msra.mxu0 0.0
    %1849 = vmatprep.subr.mxu0 0.0
    %1850 = vmatpush1.xpose.msra.mxu0 0.0
    %1851 = vmatprep.subr.mxu0 0.0
    %1852 = vmatpush1.xpose.msra.mxu0 0.0
    %1853 = vmatprep.subr.mxu0 0.0
    %1854 = vmatpush1.xpose.msra.mxu0 0.0
    %1855 = vmatprep.subr.mxu0 0.0
    %1856 = vmatpush1.xpose.msra.mxu0 0.0
    %1857 = vmatprep.subr.mxu0 0.0
    %1858 = vmatpush1.xpose.msra.mxu0 0.0
    %1859 = vmatprep.subr.mxu0 0.0
    %1860 = vmatpush1.xpose.msra.mxu0 0.0
    %1861 = vmatprep.subr.mxu0 0.0
    %1862 = vmatpush1.xpose.msra.mxu0 0.0
    %1863 = vmatprep.subr.mxu0 0.0
    %1864 = vmatpush1.xpose.msra.mxu0 0.0
    %1865 = vmatprep.subr.mxu0 0.0
    %1866 = vmatpush1.xpose.msra.mxu0 0.0
    %1867 = vmatprep.subr.mxu0 0.0
    %1868 = vmatpush1.xpose.msra.mxu0 0.0
    %1869 = vmatprep.subr.mxu0 0.0
    %1870 = vmatpush1.xpose.msra.mxu0 0.0
    %1871 = vmatprep.subr.mxu0 0.0
    %1872 = vmatpush1.xpose.msra.mxu0 0.0
    %1873 = vmatprep.subr.mxu0 0.0
    %1874 = vmatpush1.xpose.msra.mxu0 0.0
    %1875 = vmatprep.subr.mxu0 0.0
    %1876 = vmatpush1.xpose.msra.mxu0 0.0
    %1877 = vmatprep.subr.mxu0 0.0
    %1878 = vmatpush1.xpose.msra.mxu0 0.0
    %1879 = vmatprep.subr.mxu0 0.0
    %1880 = vmatpush1.xpose.msra.mxu0 0.0
    %1881 = vmatprep.subr.mxu0 0.0
    %1882 = vmatpush1.xpose.msra.mxu0 0.0
    %1883 = vmatprep.subr.mxu0 0.0
    %1884 = vmatpush1.xpose.msra.mxu0 0.0
    %1885 = vmatprep.subr.mxu0 0.0
    %1886 = vmatpush1.xpose.msra.mxu0 0.0
    %1887 = vmatprep.subr.mxu0 0.0
    %1888 = vmatpush1.xpose.msra.mxu0 0.0
    %1889 = vmatprep.subr.mxu0 0.0
    %1890 = vmatpush1.xpose.msra.mxu0 0.0
    %1891 = vmatprep.subr.mxu0 0.0
    %1892 = vmatpush1.xpose.msra.mxu0 0.0
    %1893 = vmatprep.subr.mxu0 0.0
    %1894 = vmatpush1.xpose.msra.mxu0 0.0
    %1895 = vmatprep.subr.mxu0 0.0
    %1896 = vmatpush1.xpose.msra.mxu0 0.0
    %1897 = vmatprep.subr.mxu0 0.0
    %1898 = vmatpush1.xpose.msra.mxu0 0.0
    %1899 = vmatprep.subr.mxu0 0.0
    %1900 = vmatpush1.xpose.msra.mxu0 0.0
    %1901 = vmatprep.subr.mxu0 0.0
    %1902 = vmatpush1.xpose.msra.mxu0 0.0
    %1903 = vmatprep.subr.mxu0 0.0
    %1904 = vmatpush1.xpose.msra.mxu0 0.0
    %1905 = vmatprep.subr.mxu0 0.0
    %1906 = vmatpush1.xpose.msra.mxu0 0.0
    %1907 = vmatprep.subr.mxu0 0.0
    %1908 = vmatpush1.xpose.msra.mxu0 0.0
    %1909 = vmatprep.mubr.f32.mxu0 0.0
    %1910 = vmatmul.mubr.f32.gmra.mrb[0].mxu0 %v1841
    %v1911 = vpop.f32.mrb[0].mxu0
    %v1912 = vadd.f32 0.0, %v1911
    %v1913 = vpop.f32.mrb[0].mxu0
    %1914 = vdwg.mxu0
    %v1915 = vsel %vm1581, %v1912, -inf
    %1916 = vmax.xlane.f32.xlu0 %v1915
    %v1917 = vpop.xlane.xlu0 %1916
    %v1918 = vsub.f32 %v1912, %v1917
    %v1919 = vmul.f32 %v1918, 1.442695
    %v1920 = vpow.pop %v1919
    %v1921 = vsel %vm1581, %v1920, 0.0
    %1922 = vadd.xlane.f32.xlu0 %v1921
    %v1923 = vpop.xlane.xlu0 %1922
    %v1924 = vrcp.pop %v1923
    %v1925 = vmul.f32 %v1920, %v1924
    %1926 = vrot.lane.b32.xlu0 %v1501, 112
    %v1927 = vpop.permute.xlu0 %1926
    %v1929 = vsel %vm1593, %v1925, 0
    %v1931 = vsel %vm1597, %v1927, 0
    %1933 = vmatprep.subr.mxu0 0.0
    %1934 = vmatpush1.msra.mxu0 %v1931
    %1935 = vmatprep.subr.mxu0 0.0
    %1936 = vmatpush1.msra.mxu0 0.0
    %1937 = vmatprep.subr.mxu0 0.0
    %1938 = vmatpush1.msra.mxu0 0.0
    %1939 = vmatprep.subr.mxu0 0.0
    %1940 = vmatpush1.msra.mxu0 0.0
    %1941 = vmatprep.subr.mxu0 0.0
    %1942 = vmatpush1.msra.mxu0 0.0
    %1943 = vmatprep.subr.mxu0 0.0
    %1944 = vmatpush1.msra.mxu0 0.0
    %1945 = vmatprep.subr.mxu0 0.0
    %1946 = vmatpush1.msra.mxu0 0.0
    %1947 = vmatprep.subr.mxu0 0.0
    %1948 = vmatpush1.msra.mxu0 0.0
    %1949 = vmatprep.subr.mxu0 0.0
    %1950 = vmatpush1.msra.mxu0 0.0
    %1951 = vmatprep.subr.mxu0 0.0
    %1952 = vmatpush1.msra.mxu0 0.0
    %1953 = vmatprep.subr.mxu0 0.0
    %1954 = vmatpush1.msra.mxu0 0.0
    %1955 = vmatprep.subr.mxu0 0.0
    %1956 = vmatpush1.msra.mxu0 0.0
    %1957 = vmatprep.subr.mxu0 0.0
    %1958 = vmatpush1.msra.mxu0 0.0
    %1959 = vmatprep.subr.mxu0 0.0
    %1960 = vmatpush1.msra.mxu0 0.0
    %1961 = vmatprep.subr.mxu0 0.0
    %1962 = vmatpush1.msra.mxu0 0.0
    %1963 = vmatprep.subr.mxu0 0.0
    %1964 = vmatpush1.msra.mxu0 0.0
    %1965 = vmatprep.subr.mxu0 0.0
    %1966 = vmatpush1.msra.mxu0 0.0
    %1967 = vmatprep.subr.mxu0 0.0
    %1968 = vmatpush1.msra.mxu0 0.0
    %1969 = vmatprep.subr.mxu0 0.0
    %1970 = vmatpush1.msra.mxu0 0.0
    %1971 = vmatprep.subr.mxu0 0.0
    %1972 = vmatpush1.msra.mxu0 0.0
    %1973 = vmatprep.subr.mxu0 0.0
    %1974 = vmatpush1.msra.mxu0 0.0
    %1975 = vmatprep.subr.mxu0 0.0
    %1976 = vmatpush1.msra.mxu0 0.0
    %1977 = vmatprep.subr.mxu0 0.0
    %1978 = vmatpush1.msra.mxu0 0.0
    %1979 = vmatprep.subr.mxu0 0.0
    %1980 = vmatpush1.msra.mxu0 0.0
    %1981 = vmatprep.subr.mxu0 0.0
    %1982 = vmatpush1.msra.mxu0 0.0
    %1983 = vmatprep.subr.mxu0 0.0
    %1984 = vmatpush1.msra.mxu0 0.0
    %1985 = vmatprep.subr.mxu0 0.0
    %1986 = vmatpush1.msra.mxu0 0.0
    %1987 = vmatprep.subr.mxu0 0.0
    %1988 = vmatpush1.msra.mxu0 0.0
    %1989 = vmatprep.subr.mxu0 0.0
    %1990 = vmatpush1.msra.mxu0 0.0
    %1991 = vmatprep.subr.mxu0 0.0
    %1992 = vmatpush1.msra.mxu0 0.0
    %1993 = vmatprep.subr.mxu0 0.0
    %1994 = vmatpush1.msra.mxu0 0.0
    %1995 = vmatprep.subr.mxu0 0.0
    %1996 = vmatpush1.msra.mxu0 0.0
    %1997 = vmatprep.mubr.f32.mxu0 0.0
    %1998 = vmatmul.mubr.f32.gmra.mrb[0].mxu0 %v1929
    %v1999 = vpop.f32.mrb[0].mxu0
    %v2000 = vadd.f32 0.0, %v1999
    %v2001 = vpop.f32.mrb[0].mxu0
    %2002 = vdwg.mxu0
    %2003 = vrot.lane.b32.xlu0 %v1349, 104
    %v2004 = vpop.permute.xlu0 %2003
    %2005 = vrot.lane.b32.xlu0 %v1427, 104
    %v2006 = vpop.permute.xlu0 %2005
    %v2007 = vsel %vm1504, %v2004, 0
    %v2009 = vsel %vm1504, %v2006, 0
    %2011 = vmatprep.subr.mxu0 0.0
    %2012 = vmatpush1.xpose.msra.mxu0 %v2009
    %2013 = vmatprep.subr.mxu0 0.0
    %2014 = vmatpush1.xpose.msra.mxu0 0.0
    %2015 = vmatprep.subr.mxu0 0.0
    %2016 = vmatpush1.xpose.msra.mxu0 0.0
    %2017 = vmatprep.subr.mxu0 0.0
    %2018 = vmatpush1.xpose.msra.mxu0 0.0
    %2019 = vmatprep.subr.mxu0 0.0
    %2020 = vmatpush1.xpose.msra.mxu0 0.0
    %2021 = vmatprep.subr.mxu0 0.0
    %2022 = vmatpush1.xpose.msra.mxu0 0.0
    %2023 = vmatprep.subr.mxu0 0.0
    %2024 = vmatpush1.xpose.msra.mxu0 0.0
    %2025 = vmatprep.subr.mxu0 0.0
    %2026 = vmatpush1.xpose.msra.mxu0 0.0
    %2027 = vmatprep.subr.mxu0 0.0
    %2028 = vmatpush1.xpose.msra.mxu0 0.0
    %2029 = vmatprep.subr.mxu0 0.0
    %2030 = vmatpush1.xpose.msra.mxu0 0.0
    %2031 = vmatprep.subr.mxu0 0.0
    %2032 = vmatpush1.xpose.msra.mxu0 0.0
    %2033 = vmatprep.subr.mxu0 0.0
    %2034 = vmatpush1.xpose.msra.mxu0 0.0
    %2035 = vmatprep.subr.mxu0 0.0
    %2036 = vmatpush1.xpose.msra.mxu0 0.0
    %2037 = vmatprep.subr.mxu0 0.0
    %2038 = vmatpush1.xpose.msra.mxu0 0.0
    %2039 = vmatprep.subr.mxu0 0.0
    %2040 = vmatpush1.xpose.msra.mxu0 0.0
    %2041 = vmatprep.subr.mxu0 0.0
    %2042 = vmatpush1.xpose.msra.mxu0 0.0
    %2043 = vmatprep.subr.mxu0 0.0
    %2044 = vmatpush1.xpose.msra.mxu0 0.0
    %2045 = vmatprep.subr.mxu0 0.0
    %2046 = vmatpush1.xpose.msra.mxu0 0.0
    %2047 = vmatprep.subr.mxu0 0.0
    %2048 = vmatpush1.xpose.msra.mxu0 0.0
    %2049 = vmatprep.subr.mxu0 0.0
    %2050 = vmatpush1.xpose.msra.mxu0 0.0
    %2051 = vmatprep.subr.mxu0 0.0
    %2052 = vmatpush1.xpose.msra.mxu0 0.0
    %2053 = vmatprep.subr.mxu0 0.0
    %2054 = vmatpush1.xpose.msra.mxu0 0.0
    %2055 = vmatprep.subr.mxu0 0.0
    %2056 = vmatpush1.xpose.msra.mxu0 0.0
    %2057 = vmatprep.subr.mxu0 0.0
    %2058 = vmatpush1.xpose.msra.mxu0 0.0
    %2059 = vmatprep.subr.mxu0 0.0
    %2060 = vmatpush1.xpose.msra.mxu0 0.0
    %2061 = vmatprep.subr.mxu0 0.0
    %2062 = vmatpush1.xpose.msra.mxu0 0.0
    %2063 = vmatprep.subr.mxu0 0.0
    %2064 = vmatpush1.xpose.msra.mxu0 0.0
    %2065 = vmatprep.subr.mxu0 0.0
    %2066 = vmatpush1.xpose.msra.mxu0 0.0
    %2067 = vmatprep.subr.mxu0 0.0
    %2068 = vmatpush1.xpose.msra.mxu0 0.0
    %2069 = vmatprep.subr.mxu0 0.0
    %2070 = vmatpush1.xpose.msra.mxu0 0.0
    %2071 = vmatprep.subr.mxu0 0.0
    %2072 = vmatpush1.xpose.msra.mxu0 0.0
    %2073 = vmatprep.subr.mxu0 0.0
    %2074 = vmatpush1.xpose.msra.mxu0 0.0
    %2075 = vmatprep.mubr.f32.mxu0 0.0
    %2076 = vmatmul.mubr.f32.gmra.mrb[0].mxu0 %v2007
    %v2077 = vpop.f32.mrb[0].mxu0
    %v2078 = vadd.f32 0.0, %v2077
    %v2079 = vpop.f32.mrb[0].mxu0
    %2080 = vdwg.mxu0
    %v2081 = vsel %vm1581, %v2078, -inf
    %2082 = vmax.xlane.f32.xlu0 %v2081
    %v2083 = vpop.xlane.xlu0 %2082
    %v2084 = vsub.f32 %v2078, %v2083
    %v2085 = vmul.f32 %v2084, 1.442695
    %v2086 = vpow.pop %v2085
    %v2087 = vsel %vm1581, %v2086, 0.0
    %2088 = vadd.xlane.f32.xlu0 %v2087
    %v2089 = vpop.xlane.xlu0 %2088
    %v2090 = vrcp.pop %v2089
    %v2091 = vmul.f32 %v2086, %v2090
    %2092 = vrot.lane.b32.xlu0 %v1501, 104
    %v2093 = vpop.permute.xlu0 %2092
    %v2095 = vsel %vm1593, %v2091, 0
    %v2097 = vsel %vm1597, %v2093, 0
    %2099 = vmatprep.subr.mxu0 0.0
    %2100 = vmatpush1.msra.mxu0 %v2097
    %2101 = vmatprep.subr.mxu0 0.0
    %2102 = vmatpush1.msra.mxu0 0.0
    %2103 = vmatprep.subr.mxu0 0.0
    %2104 = vmatpush1.msra.mxu0 0.0
    %2105 = vmatprep.subr.mxu0 0.0
    %2106 = vmatpush1.msra.mxu0 0.0
    %2107 = vmatprep.subr.mxu0 0.0
    %2108 = vmatpush1.msra.mxu0 0.0
    %2109 = vmatprep.subr.mxu0 0.0
    %2110 = vmatpush1.msra.mxu0 0.0
    %2111 = vmatprep.subr.mxu0 0.0
    %2112 = vmatpush1.msra.mxu0 0.0
    %2113 = vmatprep.subr.mxu0 0.0
    %2114 = vmatpush1.msra.mxu0 0.0
    %2115 = vmatprep.subr.mxu0 0.0
    %2116 = vmatpush1.msra.mxu0 0.0
    %2117 = vmatprep.subr.mxu0 0.0
    %2118 = vmatpush1.msra.mxu0 0.0
    %2119 = vmatprep.subr.mxu0 0.0
    %2120 = vmatpush1.msra.mxu0 0.0
    %2121 = vmatprep.subr.mxu0 0.0
    %2122 = vmatpush1.msra.mxu0 0.0
    %2123 = vmatprep.subr.mxu0 0.0
    %2124 = vmatpush1.msra.mxu0 0.0
    %2125 = vmatprep.subr.mxu0 0.0
    %2126 = vmatpush1.msra.mxu0 0.0
    %2127 = vmatprep.subr.mxu0 0.0
    %2128 = vmatpush1.msra.mxu0 0.0
    %2129 = vmatprep.subr.mxu0 0.0
    %2130 = vmatpush1.msra.mxu0 0.0
    %2131 = vmatprep.subr.mxu0 0.0
    %2132 = vmatpush1.msra.mxu0 0.0
    %2133 = vmatprep.subr.mxu0 0.0
    %2134 = vmatpush1.msra.mxu0 0.0
    %2135 = vmatprep.subr.mxu0 0.0
    %2136 = vmatpush1.msra.mxu0 0.0
    %2137 = vmatprep.subr.mxu0 0.0
    %2138 = vmatpush1.msra.mxu0 0.0
    %2139 = vmatprep.subr.mxu0 0.0
    %2140 = vmatpush1.msra.mxu0 0.0
    %2141 = vmatprep.subr.mxu0 0.0
    %2142 = vmatpush1.msra.mxu0 0.0
    %2143 = vmatprep.subr.mxu0 0.0
    %2144 = vmatpush1.msra.mxu0 0.0
    %2145 = vmatprep.subr.mxu0 0.0
    %2146 = vmatpush1.msra.mxu0 0.0
    %2147 = vmatprep.subr.mxu0 0.0
    %2148 = vmatpush1.msra.mxu0 0.0
    %2149 = vmatprep.subr.mxu0 0.0
    %2150 = vmatpush1.msra.mxu0 0.0
    %2151 = vmatprep.subr.mxu0 0.0
    %2152 = vmatpush1.msra.mxu0 0.0
    %2153 = vmatprep.subr.mxu0 0.0
    %2154 = vmatpush1.msra.mxu0 0.0
    %2155 = vmatprep.subr.mxu0 0.0
    %2156 = vmatpush1.msra.mxu0 0.0
    %2157 = vmatprep.subr.mxu0 0.0
    %2158 = vmatpush1.msra.mxu0 0.0
    %2159 = vmatprep.subr.mxu0 0.0
    %2160 = vmatpush1.msra.mxu0 0.0
    %2161 = vmatprep.subr.mxu0 0.0
    %2162 = vmatpush1.msra.mxu0 0.0
    %2163 = vmatprep.mubr.f32.mxu0 0.0
    %2164 = vmatmul.mubr.f32.gmra.mrb[0].mxu0 %v2095
    %v2165 = vpop.f32.mrb[0].mxu0
    %v2166 = vadd.f32 0.0, %v2165
    %v2167 = vpop.f32.mrb[0].mxu0
    %2168 = vdwg.mxu0
    %2170 = vrot.lane.b32.xlu0 %v1834, 8
    %v2171 = vpop.permute.xlu0 %2170
    %2174 = vrot.lane.b32.xlu0 %v2000, 16
    %v2175 = vpop.permute.xlu0 %2174
    %2178 = vrot.lane.b32.xlu0 %v2166, 24
    %v2179 = vpop.permute.xlu0 %2178
    %v2181 = vsel %vm1504, %v1668, %v2171
    %vm2182 = vcmask 130048
    %v2183 = vsel %vm2182, %v2181, %v2175
    %vm2184 = vcmask 195584
    %v2185 = vsel %vm2184, %v2183, %v2179
    %v2186 = vlaneseq
    %v2187 = vshrl.u32 %v2186, 7
    %v2188 = vsub.s32 3, %v2187
    %v2189 = vrot.slane %v1271, %v2188
    %v2191 = vsel %vm155, %v2185, 0
    %2193 = vmatprep.subr.mxu0 0.0
    %2194 = vmatpush1.msra.mxu0 %v1267
    %2195 = vmatprep.subr.mxu0 0.0
    %2196 = vmatpush1.msra.mxu0 %v1268
    %2197 = vmatprep.subr.mxu0 0.0
    %2198 = vmatpush1.msra.mxu0 %v1269
    %2199 = vmatprep.subr.mxu0 0.0
    %2200 = vmatpush1.msra.mxu0 %v1270
    %2201 = vmatprep.subr.mxu0 0.0
    %2202 = vmatpush1.msra.mxu0 0.0
    %2203 = vmatprep.subr.mxu0 0.0
    %2204 = vmatpush1.msra.mxu0 0.0
    %2205 = vmatprep.subr.mxu0 0.0
    %2206 = vmatpush1.msra.mxu0 0.0
    %2207 = vmatprep.subr.mxu0 0.0
    %2208 = vmatpush1.msra.mxu0 0.0
    %2209 = vmatprep.subr.mxu0 0.0
    %2210 = vmatpush1.msra.mxu0 0.0
    %2211 = vmatprep.subr.mxu0 0.0
    %2212 = vmatpush1.msra.mxu0 0.0
    %2213 = vmatprep.subr.mxu0 0.0
    %2214 = vmatpush1.msra.mxu0 0.0
    %2215 = vmatprep.subr.mxu0 0.0
    %2216 = vmatpush1.msra.mxu0 0.0
    %2217 = vmatprep.subr.mxu0 0.0
    %2218 = vmatpush1.msra.mxu0 0.0
    %2219 = vmatprep.subr.mxu0 0.0
    %2220 = vmatpush1.msra.mxu0 0.0
    %2221 = vmatprep.subr.mxu0 0.0
    %2222 = vmatpush1.msra.mxu0 0.0
    %2223 = vmatprep.subr.mxu0 0.0
    %2224 = vmatpush1.msra.mxu0 0.0
    %2225 = vmatprep.subr.mxu0 0.0
    %2226 = vmatpush1.msra.mxu0 0.0
    %2227 = vmatprep.subr.mxu0 0.0
    %2228 = vmatpush1.msra.mxu0 0.0
    %2229 = vmatprep.subr.mxu0 0.0
    %2230 = vmatpush1.msra.mxu0 0.0
    %2231 = vmatprep.subr.mxu0 0.0
    %2232 = vmatpush1.msra.mxu0 0.0
    %2233 = vmatprep.subr.mxu0 0.0
    %2234 = vmatpush1.msra.mxu0 0.0
    %2235 = vmatprep.subr.mxu0 0.0
    %2236 = vmatpush1.msra.mxu0 0.0
    %2237 = vmatprep.subr.mxu0 0.0
    %2238 = vmatpush1.msra.mxu0 0.0
    %2239 = vmatprep.subr.mxu0 0.0
    %2240 = vmatpush1.msra.mxu0 0.0
    %2241 = vmatprep.subr.mxu0 0.0
    %2242 = vmatpush1.msra.mxu0 0.0
    %2243 = vmatprep.subr.mxu0 0.0
    %2244 = vmatpush1.msra.mxu0 0.0
    %2245 = vmatprep.subr.mxu0 0.0
    %2246 = vmatpush1.msra.mxu0 0.0
    %2247 = vmatprep.subr.mxu0 0.0
    %2248 = vmatpush1.msra.mxu0 0.0
    %2249 = vmatprep.subr.mxu0 0.0
    %2250 = vmatpush1.msra.mxu0 0.0
    %2251 = vmatprep.subr.mxu0 0.0
    %2252 = vmatpush1.msra.mxu0 0.0
    %2253 = vmatprep.subr.mxu0 0.0
    %2254 = vmatpush1.msra.mxu0 0.0
    %2255 = vmatprep.subr.mxu0 0.0
    %2256 = vmatpush1.msra.mxu0 0.0
    %2257 = vmatprep.mubr.f32.mxu0 0.0
    %2258 = vmatmul.mubr.f32.gmra.mrb[0].mxu0 %v2191
    %v2259 = vpop.f32.mrb[0].mxu0
    %v2260 = vadd.f32 %v2189, %v2259
    %v2261 = vpop.f32.mrb[0].mxu0
    %2262 = vdwg.mxu0
    %vm2263 = vcmask 254976
    %2264 = vst.msk [vmem:[#allocation7] sm:$0x3] %vm2263, %v2260
    // Predicated region
    $region30: #{tpu_custom_call.1} parent=1 // pred_check
      _
    $region31: #{tpu_custom_call.1} parent=1 // pred_check_branch
      %2266 = sbr.rel (0) target = $region33
    $region32: #{tpu_custom_call.1} parent=1 // pred_region
      %s2268 = ssub.s32 32, 32
      %2269 = vsyncadd [#allocation4], %s2268
      %s2271 = sshll.u32 [#allocation7], 4
      %s2272 = int_to_ptr.vmem [resolvable:$true] %s2271
      %2274 = dma.vmem_to_hbm [thread:$0]  %s2272, 32, %s5, [#allocation4]
    $region33: #{tpu_custom_call.1} parent=1 // pred_fallthru
      _
    // Predicated region
    $region34: #{tpu_custom_call.1} parent=1 // pred_check
      _
    $region35: #{tpu_custom_call.1} parent=1 // pred_check_branch
      %2276 = sbr.rel (0) target = $region37
    $region36: #{tpu_custom_call.1} parent=1 // pred_region
      %2277 = dma.done [#allocation4], 32
    $region37: #{tpu_custom_call.1} parent=1 // pred_fallthru
      _
    %2278 = vsyncpa [#allocation3], 1
    %2279 = vsyncpa [#allocation6], 1
    %2280 = vsyncpa [#allocation4], 1

</llo_original>
